<compile_context>
chip_gen: v7x
topology: tpu7x:2x2x1
jax: 0.10.0
libtpu: 0.0.40
codegen_flags: <defaults>
</compile_context>

<pallas_src>
import jax
import jax.numpy as jnp
from jax.experimental import pallas as pl
from jax.experimental.pallas import tpu as pltpu

N_EMBD = 192
HIDDEN = 4 * N_EMBD      # 768
ROW_TILE_MAX = 2048      # ~14-18 MiB working set, well inside all VMEM limits


def ff_kernel(x_ref, w1_ref, b1_ref, w2_ref, b2_ref, o_ref):
    # x_ref: (rows, C) f32/bf16 ; w1_ref: (C, 4C) bf16 ; w2_ref: (4C, C) bf16
    x = x_ref[...]
    # Linear 1: bf16 MXU inputs, f32 accumulation; bias + ReLU in f32.
    h = jnp.dot(x.astype(jnp.bfloat16), w1_ref[...],
                preferred_element_type=jnp.float32) + b1_ref[...]
    h = jnp.maximum(h, 0.0)
    # Linear 2: bf16 MXU inputs, f32 accumulation; bias in f32.
    y = jnp.dot(h.astype(jnp.bfloat16), w2_ref[...],
                preferred_element_type=jnp.float32) + b2_ref[...]
    # Dropout is an inference-mode identity (p=0.1 only active in training).
    # TODO(synk): training-mode dropout would need pltpu.prng_seed/prng_random_bits.
    o_ref[...] = y.astype(o_ref.dtype)


def _round_up(v, m):
    return ((v + m - 1) // m) * m


def _vmem_limit_bytes():
    # Generation-aware scoped-VMEM limit: ~75% of physical, capped at 64 MiB
    # (we never need more than ~18 MiB).  v7x (64 MiB physical) -> 48 MiB,
    # v5e/v6e (128 MiB physical) -> 64 MiB.  Falls back to 48 MiB if the
    # hardware query is unavailable.
    cap = 64 * 1024 * 1024
    try:
        cap = int(getattr(pltpu.get_tpu_info(), "vmem_capacity_bytes", cap))
    except Exception:
        pass
    return min(cap * 3 // 4, 64 * 1024 * 1024)


def _ff_call(x2, w1_bf, b1_2d, w2_bf, b2_2d, row_tile, single_buffer_weights):
    M_pad, C = x2.shape
    H = w1_bf.shape[1]
    grid = (M_pad // row_tile,)

    # Constant-index_map operands never change across the grid; single-buffer
    # them to reclaim ~0.6 MiB of VMEM and a little DMA-descriptor work.
    const_kwargs = (dict(pipeline_mode=pl.Buffered(1))
                    if single_buffer_weights else {})

    in_specs = [
        pl.BlockSpec((row_tile, C), lambda i: (i, 0)),            # x rows
        pl.BlockSpec((C, H), lambda i: (0, 0), **const_kwargs),   # W1 (bf16)
        pl.BlockSpec((1, H), lambda i: (0, 0), **const_kwargs),   # b1 (f32)
        pl.BlockSpec((H, C), lambda i: (0, 0), **const_kwargs),   # W2 (bf16)
        pl.BlockSpec((1, C), lambda i: (0, 0), **const_kwargs),   # b2 (f32)
    ]

    itemsize = x2.dtype.itemsize
    bytes_accessed = (
        M_pad * C * itemsize                       # x in
        + M_pad * C * itemsize                     # y out
        + w1_bf.size * w1_bf.dtype.itemsize        # W1
        + w2_bf.size * w2_bf.dtype.itemsize        # W2
        + b1_2d.size * 4 + b2_2d.size * 4)         # biases
    cost = pl.CostEstimate(flops=4 * M_pad * C * H,
                           transcendentals=0,
                           bytes_accessed=bytes_accessed)

    return pl.pallas_call(
        ff_kernel,
        out_shape=jax.ShapeDtypeStruct((M_pad, C), x2.dtype),
        grid_spec=pltpu.PrefetchScalarGridSpec(
            num_scalar_prefetch=0,
            grid=grid,
            in_specs=in_specs,
            out_specs=pl.BlockSpec((row_tile, C), lambda i: (i, 0)),
        ),
        compiler_params=pltpu.CompilerParams(
            dimension_semantics=("parallel",),
            vmem_limit_bytes=_vmem_limit_bytes(),
        ),
        cost_estimate=cost,
    )(x2, w1_bf, b1_2d, w2_bf, b2_2d)


def feedforward(x, params):
    """x: (..., N_EMBD), f32 (or bf16). Returns same shape/dtype."""
    w1, b1, w2, b2 = params
    orig_shape = x.shape
    C = orig_shape[-1]
    assert C == N_EMBD

    # Fold all leading dims into one row dimension.
    x2 = x.reshape(-1, C)
    M = x2.shape[0]

    # Row tile: as large as possible (amortize per-step overhead, long DMA
    # bursts), capped by ROW_TILE_MAX for VMEM, and capped at ceil(M/2)
    # (8-row aligned) so the grid has >= 2 "parallel" steps whenever M can be
    # split -> both v7x TensorCores stay busy.
    row_tile = min(ROW_TILE_MAX, max(8, _round_up((M + 1) // 2, 8)))
    M_pad = _round_up(M, row_tile)
    if M_pad != M:
        x2 = jnp.pad(x2, ((0, M_pad - M), (0, 0)))

    # Weights to bf16 once (MXU-native, half the VMEM/DMA); biases stay f32
    # (elementwise math is f32 -> v5e-safe) and are 2-D for clean VMEM tiling.
    w1_bf = w1.astype(jnp.bfloat16)
    w2_bf = w2.astype(jnp.bfloat16)
    b1_2d = b1.reshape(1, HIDDEN).astype(jnp.float32)
    b2_2d = b2.reshape(1, C).astype(jnp.float32)

    try:
        out = _ff_call(x2, w1_bf, b1_2d, w2_bf, b2_2d, row_tile,
                       single_buffer_weights=True)
        out = jax.block_until_ready(out)  # surface any lowering/runtime reject
    except Exception:
        # Installed Pallas rejects pipeline_mode=pl.Buffered(1) on constant
        # operands; retry with default double-buffering (costs ~0.6 MiB VMEM).
        out = _ff_call(x2, w1_bf, b1_2d, w2_bf, b2_2d, row_tile,
                       single_buffer_weights=False)

    return out[:M].reshape(orig_shape)


def init_params(key):
    ks = jax.random.split(key, 4)
    s = 0.02
    w1 = s * jax.random.normal(ks[0], (N_EMBD, HIDDEN), jnp.float32)
    b1 = s * jax.random.normal(ks[1], (HIDDEN,), jnp.float32)
    w2 = s * jax.random.normal(ks[2], (HIDDEN, N_EMBD), jnp.float32)
    b2 = s * jax.random.normal(ks[3], (N_EMBD,), jnp.float32)
    return (w1, b1, w2, b2)


def reference_feedforward(x, params):
    """Pure-JAX f32 reference reproducing the PyTorch forward (eval mode)."""
    w1, b1, w2, b2 = params
    h = jnp.maximum(x @ w1 + b1, 0.0)
    return h @ w2 + b2


if __name__ == "__main__":
    key = jax.random.PRNGKey(0)
    kx, kp = jax.random.split(key)
    B, T = 2, 8
    x = jax.random.normal(kx, (B, T, N_EMBD), jnp.float32)
    params = init_params(kp)

    out = feedforward(x, params)
    out = jax.block_until_ready(out)

    ref = reference_feedforward(x, params)
    assert out.shape == (B, T, N_EMBD)
    # bf16 MXU inputs (f32 accumulation) -> slightly looser tolerance vs f32 ref.
    assert jnp.allclose(out, ref, atol=2e-2, rtol=2e-2), (
        float(jnp.max(jnp.abs(out - ref))))
    print("KERNEL_OK")
</pallas_src>

<mosaic_0001>
module attributes {stable_mosaic.version = 11 : i64} {
  func.func @ff_kernel(%arg0: i32, %arg1: memref<8x192xf32, #tpu.memory_space<vmem>>, %arg2: memref<192x768xbf16, #tpu.memory_space<vmem>>, %arg3: memref<1x768xf32, #tpu.memory_space<vmem>>, %arg4: memref<768x192xbf16, #tpu.memory_space<vmem>>, %arg5: memref<1x192xf32, #tpu.memory_space<vmem>>, %arg6: memref<8x192xf32, #tpu.memory_space<vmem>>) attributes {dimension_semantics = [#tpu.dimension_semantics<parallel>], iteration_bounds = array<i64: 2>, scalar_prefetch = 0 : i64, scratch_operands = 0 : i64, tpu.core_type = #tpu.core_type<tc>, window_params = [{transform_indices = @transform_0, window_bounds = array<i64: 8, 192>}, {pipeline_mode = #tpu.pipeline_mode<synchronous>, transform_indices = @transform_1, window_bounds = array<i64: 192, 768>}, {pipeline_mode = #tpu.pipeline_mode<synchronous>, transform_indices = @transform_2, window_bounds = array<i64: 1, 768>}, {pipeline_mode = #tpu.pipeline_mode<synchronous>, transform_indices = @transform_3, window_bounds = array<i64: 768, 192>}, {pipeline_mode = #tpu.pipeline_mode<synchronous>, transform_indices = @transform_4, window_bounds = array<i64: 1, 192>}, {transform_indices = @transform_5, window_bounds = array<i64: 8, 192>}]} {
    %c0 = arith.constant 0 : index
    %c0_0 = arith.constant 0 : index
    %0 = vector.load %arg1[%c0, %c0_0] : memref<8x192xf32, #tpu.memory_space<vmem>>, vector<8x192xf32>
    %1 = arith.truncf %0 : vector<8x192xf32> to vector<8x192xbf16>
    %c0_1 = arith.constant 0 : index
    %c0_2 = arith.constant 0 : index
    %2 = vector.load %arg2[%c0_1, %c0_2] : memref<192x768xbf16, #tpu.memory_space<vmem>>, vector<192x768xbf16>
    %cst = arith.constant dense<0.000000e+00> : vector<8x768xf32>
    %3 = tpu.matmul %1, %2, %cst {dimension_numbers = #tpu.dot_dimension_numbers<[1], [0], [0], [1], [0, 0, 1, 1], [], []>} : vector<8x192xbf16>, vector<192x768xbf16>, vector<8x768xf32> -> vector<8x768xf32>
    %c0_3 = arith.constant 0 : index
    %c0_4 = arith.constant 0 : index
    %4 = vector.load %arg3[%c0_3, %c0_4] : memref<1x768xf32, #tpu.memory_space<vmem>>, vector<1x768xf32>
    %5 = vector.broadcast %4 : vector<1x768xf32> to vector<8x768xf32>
    %6 = arith.addf %3, %5 : vector<8x768xf32>
    %cst_5 = arith.constant 0.000000e+00 : f32
    %7 = vector.broadcast %cst_5 : f32 to vector<8x768xf32>
    %8 = arith.maximumf %6, %7 : vector<8x768xf32>
    %9 = arith.truncf %8 : vector<8x768xf32> to vector<8x768xbf16>
    %c0_6 = arith.constant 0 : index
    %c0_7 = arith.constant 0 : index
    %10 = vector.load %arg4[%c0_6, %c0_7] : memref<768x192xbf16, #tpu.memory_space<vmem>>, vector<768x192xbf16>
    %cst_8 = arith.constant dense<0.000000e+00> : vector<8x192xf32>
    %11 = tpu.matmul %9, %10, %cst_8 {dimension_numbers = #tpu.dot_dimension_numbers<[1], [0], [0], [1], [0, 0, 1, 1], [], []>} : vector<8x768xbf16>, vector<768x192xbf16>, vector<8x192xf32> -> vector<8x192xf32>
    %c0_9 = arith.constant 0 : index
    %c0_10 = arith.constant 0 : index
    %12 = vector.load %arg5[%c0_9, %c0_10] : memref<1x192xf32, #tpu.memory_space<vmem>>, vector<1x192xf32>
    %13 = vector.broadcast %12 : vector<1x192xf32> to vector<8x192xf32>
    %14 = arith.addf %11, %13 : vector<8x192xf32>
    %c0_11 = arith.constant 0 : index
    %c0_12 = arith.constant 0 : index
    %15 = vector.load %arg6[%c0_11, %c0_12] : memref<8x192xf32, #tpu.memory_space<vmem>>, vector<8x192xf32>
    tpu.vector_store %arg6[%c0_11, %c0_12], %14 {strides = array<i32>} : memref<8x192xf32, #tpu.memory_space<vmem>>, vector<8x192xf32>,
    return
  }
  func.func @transform_0(%arg0: i32) -> (i32, i32) {
    %c0_i32 = arith.constant 0 : i32
    %c0_i32_0 = arith.constant 0 : i32
    return %arg0, %c0_i32 : i32, i32
  }
  func.func @transform_1(%arg0: i32) -> (i32, i32) {
    %c0_i32 = arith.constant 0 : i32
    %c0_i32_0 = arith.constant 0 : i32
    %c0_i32_1 = arith.constant 0 : i32
    return %c0_i32, %c0_i32_0 : i32, i32
  }
  func.func @transform_2(%arg0: i32) -> (i32, i32) {
    %c0_i32 = arith.constant 0 : i32
    %c0_i32_0 = arith.constant 0 : i32
    %c0_i32_1 = arith.constant 0 : i32
    return %c0_i32, %c0_i32_0 : i32, i32
  }
  func.func @transform_3(%arg0: i32) -> (i32, i32) {
    %c0_i32 = arith.constant 0 : i32
    %c0_i32_0 = arith.constant 0 : i32
    %c0_i32_1 = arith.constant 0 : i32
    return %c0_i32, %c0_i32_0 : i32, i32
  }
  func.func @transform_4(%arg0: i32) -> (i32, i32) {
    %c0_i32 = arith.constant 0 : i32
    %c0_i32_0 = arith.constant 0 : i32
    %c0_i32_1 = arith.constant 0 : i32
    return %c0_i32, %c0_i32_0 : i32, i32
  }
  func.func @transform_5(%arg0: i32) -> (i32, i32) {
    %c0_i32 = arith.constant 0 : i32
    %c0_i32_0 = arith.constant 0 : i32
    return %arg0, %c0_i32 : i32, i32
  }
}

module attributes {stable_mosaic.version = 11 : i64} {
  func.func @ff_kernel(%arg0: i32, %arg1: memref<8x192xf32, #tpu.memory_space<vmem>>, %arg2: memref<192x768xbf16, #tpu.memory_space<vmem>>, %arg3: memref<1x768xf32, #tpu.memory_space<vmem>>, %arg4: memref<768x192xbf16, #tpu.memory_space<vmem>>, %arg5: memref<1x192xf32, #tpu.memory_space<vmem>>, %arg6: memref<8x192xf32, #tpu.memory_space<vmem>>) attributes {dimension_semantics = [#tpu.dimension_semantics<parallel>], iteration_bounds = array<i64: 2>, scalar_prefetch = 0 : i64, scratch_operands = 0 : i64, tpu.core_type = #tpu.core_type<tc>, window_params = [{transform_indices = @transform_0, window_bounds = array<i64: 8, 192>}, {pipeline_mode = #tpu.pipeline_mode<synchronous>, transform_indices = @transform_1, window_bounds = array<i64: 192, 768>}, {pipeline_mode = #tpu.pipeline_mode<synchronous>, transform_indices = @transform_2, window_bounds = array<i64: 1, 768>}, {pipeline_mode = #tpu.pipeline_mode<synchronous>, transform_indices = @transform_3, window_bounds = array<i64: 768, 192>}, {pipeline_mode = #tpu.pipeline_mode<synchronous>, transform_indices = @transform_4, window_bounds = array<i64: 1, 192>}, {transform_indices = @transform_5, window_bounds = array<i64: 8, 192>}]} {
    %c0 = arith.constant 0 : index
    %c0_0 = arith.constant 0 : index
    %0 = vector.load %arg1[%c0, %c0_0] : memref<8x192xf32, #tpu.memory_space<vmem>>, vector<8x192xf32>
    %1 = arith.truncf %0 : vector<8x192xf32> to vector<8x192xbf16>
    %c0_1 = arith.constant 0 : index
    %c0_2 = arith.constant 0 : index
    %2 = vector.load %arg2[%c0_1, %c0_2] : memref<192x768xbf16, #tpu.memory_space<vmem>>, vector<192x768xbf16>
    %cst = arith.constant dense<0.000000e+00> : vector<8x768xf32>
    %3 = tpu.matmul %1, %2, %cst {dimension_numbers = #tpu.dot_dimension_numbers<[1], [0], [0], [1], [0, 0, 1, 1], [], []>} : vector<8x192xbf16>, vector<192x768xbf16>, vector<8x768xf32> -> vector<8x768xf32>
    %c0_3 = arith.constant 0 : index
    %c0_4 = arith.constant 0 : index
    %4 = vector.load %arg3[%c0_3, %c0_4] : memref<1x768xf32, #tpu.memory_space<vmem>>, vector<1x768xf32>
    %5 = vector.broadcast %4 : vector<1x768xf32> to vector<8x768xf32>
    %6 = arith.addf %3, %5 : vector<8x768xf32>
    %cst_5 = arith.constant 0.000000e+00 : f32
    %7 = vector.broadcast %cst_5 : f32 to vector<8x768xf32>
    %8 = arith.maximumf %6, %7 : vector<8x768xf32>
    %9 = arith.truncf %8 : vector<8x768xf32> to vector<8x768xbf16>
    %c0_6 = arith.constant 0 : index
    %c0_7 = arith.constant 0 : index
    %10 = vector.load %arg4[%c0_6, %c0_7] : memref<768x192xbf16, #tpu.memory_space<vmem>>, vector<768x192xbf16>
    %cst_8 = arith.constant dense<0.000000e+00> : vector<8x192xf32>
    %11 = tpu.matmul %9, %10, %cst_8 {dimension_numbers = #tpu.dot_dimension_numbers<[1], [0], [0], [1], [0, 0, 1, 1], [], []>} : vector<8x768xbf16>, vector<768x192xbf16>, vector<8x192xf32> -> vector<8x192xf32>
    %c0_9 = arith.constant 0 : index
    %c0_10 = arith.constant 0 : index
    %12 = vector.load %arg5[%c0_9, %c0_10] : memref<1x192xf32, #tpu.memory_space<vmem>>, vector<1x192xf32>
    %13 = vector.broadcast %12 : vector<1x192xf32> to vector<8x192xf32>
    %14 = arith.addf %11, %13 : vector<8x192xf32>
    %c0_11 = arith.constant 0 : index
    %c0_12 = arith.constant 0 : index
    %15 = vector.load %arg6[%c0_11, %c0_12] : memref<8x192xf32, #tpu.memory_space<vmem>>, vector<8x192xf32>
    tpu.vector_store %arg6[%c0_11, %c0_12], %14 {strides = array<i32>} : memref<8x192xf32, #tpu.memory_space<vmem>>, vector<8x192xf32>,
    return
  }
  func.func @transform_0(%arg0: i32) -> (i32, i32) {
    %c0_i32 = arith.constant 0 : i32
    %c0_i32_0 = arith.constant 0 : i32
    return %arg0, %c0_i32 : i32, i32
  }
  func.func @transform_1(%arg0: i32) -> (i32, i32) {
    %c0_i32 = arith.constant 0 : i32
    %c0_i32_0 = arith.constant 0 : i32
    %c0_i32_1 = arith.constant 0 : i32
    return %c0_i32, %c0_i32_0 : i32, i32
  }
  func.func @transform_2(%arg0: i32) -> (i32, i32) {
    %c0_i32 = arith.constant 0 : i32
    %c0_i32_0 = arith.constant 0 : i32
    %c0_i32_1 = arith.constant 0 : i32
    return %c0_i32, %c0_i32_0 : i32, i32
  }
  func.func @transform_3(%arg0: i32) -> (i32, i32) {
    %c0_i32 = arith.constant 0 : i32
    %c0_i32_0 = arith.constant 0 : i32
    %c0_i32_1 = arith.constant 0 : i32
    return %c0_i32, %c0_i32_0 : i32, i32
  }
  func.func @transform_4(%arg0: i32) -> (i32, i32) {
    %c0_i32 = arith.constant 0 : i32
    %c0_i32_0 = arith.constant 0 : i32
    %c0_i32_1 = arith.constant 0 : i32
    return %c0_i32, %c0_i32_0 : i32, i32
  }
  func.func @transform_5(%arg0: i32) -> (i32, i32) {
    %c0_i32 = arith.constant 0 : i32
    %c0_i32_0 = arith.constant 0 : i32
    return %arg0, %c0_i32 : i32, i32
  }
}

</mosaic_0001>

<llo_original>
// kernel: tpu_custom_call.1
$region0: #{tpu_custom_call.1}
  #allocation0 [shape = 'u32[]', space=smem, size = 0x4, offset = 0x4, fixed_abs, tag = 'smem constant byte address 0x4 - core index']
  #allocation1 [shape = 'u32[144,128]{1,0:T(1,128)}', space=vmem, size = 0x12000, scoped, tag = 'internal scratch']
  %s0 = inlined_call_operand.vmem [shape: f32[16,192], index: 0, kind: input, shape index: {}]
  %s1 = inlined_call_operand.vmem [shape: bf16[192,768], index: 1, kind: input, shape index: {}]
  %s2 = inlined_call_operand.vmem [shape: f32[1,768], index: 2, kind: input, shape index: {}]
  %s3 = inlined_call_operand.vmem [shape: bf16[768,192], index: 3, kind: input, shape index: {}]
  %s4 = inlined_call_operand.vmem [shape: f32[1,192], index: 4, kind: input, shape index: {}]
  %s5 = inlined_call_operand.hbm [shape: f32[16,192], index: 5, kind: output, shape index: {}]
  %s6 = sld [smem:[#allocation0]]
  $region53: #{tpu_custom_call.1} parent=0
    _
  %s8 = ssub.s32 1, %s6
  %s9 = scalar_select 0, %s8, %s6
  $region1: #{tpu_custom_call.1} parent=0
    #allocation2 [shape = 'u8[16384]{0}', space=vmem, size = 0x4000, scoped, tag = 'output window, operand 0']
    #allocation3 [shape = 's32[2]{0}', space=sflag, size = 0x8, scoped, tag = 'scoped memory for tpu_custom_call.1']
    %10 = vsyncpa [#allocation3], 0
    %s11 = scalar_lea.sflag [#allocation3], 1
    %12 = vsyncpa %s11, 0
    loop: start=0, step=1, limit=4
    $region2: #{tpu_custom_call.1} parent=1 // loop_pre_header
      _
    $region3: #{tpu_custom_call.1} parent=1 // loop_header
      %s14 = sphi 0, %s18
      %p15 = scmp.ge.s32.totalorder %s14, 4
      %s24 = sphi 0, %s26
      %s27 = sphi 0, %s24
      %s28 = sphi 0, %s27
      %s44 = sphi 0, %s28
      %s48 = sphi 0, %s48
      %s50 = sphi 0, %s48
      %s51 = sphi 0, %s50
      %s65 = sphi 0, %s51
      %s69 = sphi 0, %s69
      %s71 = sphi 0, %s69
      %s72 = sphi 0, %s71
      %s86 = sphi 0, %s72
      %s90 = sphi 0, %s90
      %s92 = sphi 0, %s90
      %s93 = sphi 0, %s92
      %s107 = sphi 0, %s93
      %s111 = sphi 0, %s111
      %s113 = sphi 0, %s111
      %s114 = sphi 0, %s113
      %s128 = sphi 0, %s114
      %s134 = sphi 0, %s136
      %s137 = sphi 0, %s134
      %s138 = sphi 0, %s137
      %s154 = sphi 0, %s138
    $region4: #{tpu_custom_call.1} parent=1 // loop_header_branch
      %17 = sbr.rel (%p15) target = $region8
    $region5: #{tpu_custom_call.1} parent=1 // loop_body
      %s19 = ssub.s32 %s14, 1
      %s20 = ssub.s32 %s14, 2
      %s21 = sadd.s32 %s14, 1
      %s22 = ssub.s32 %s14, %s21
      %p23 = scmp.eq.s32.totalorder %s22, 0
      %s25 = sadd.s32 %s24, 1
      %s26 = scalar_select %p23, %s24, %s25
      %p29 = pneg %p23
      %p30 = scmp.eq.s32.totalorder %s14, 1
      %p31 = por %p29, %p30
      %p32 = scmp.ne.s32.totalorder %s24, %s27
      %p33 = scmp.eq.s32.totalorder %s14, 0
      %p34 = por %p32, %p33
      %p35 = scmp.ne.s32.totalorder %s24, %s27
      %p36 = scmp.eq.s32.totalorder %s19, 1
      %p37 = por %p35, %p36
      %p38 = scmp.ne.s32.totalorder %s27, %s28
      %p39 = scmp.eq.s32.totalorder %s19, 0
      %p40 = por %p38, %p39
      %p41 = scmp.ne.s32.totalorder %s27, %s28
      %p42 = scmp.eq.s32.totalorder %s20, 1
      %p43 = por %p41, %p42
      %p45 = scmp.ne.s32.totalorder %s28, %s44
      %p46 = scmp.eq.s32.totalorder %s20, 0
      %p47 = por %p45, %p46
      %s49 = sadd.s32 %s48, 1
      %p52 = scmp.eq.s32.totalorder %s14, 1
      %p53 = scmp.ne.s32.totalorder %s48, %s50
      %p54 = scmp.eq.s32.totalorder %s14, 0
      %p55 = por %p53, %p54
      %p56 = scmp.ne.s32.totalorder %s48, %s50
      %p57 = scmp.eq.s32.totalorder %s19, 1
      %p58 = por %p56, %p57
      %p59 = scmp.ne.s32.totalorder %s50, %s51
      %p60 = scmp.eq.s32.totalorder %s19, 0
      %p61 = por %p59, %p60
      %p62 = scmp.ne.s32.totalorder %s50, %s51
      %p63 = scmp.eq.s32.totalorder %s20, 1
      %p64 = por %p62, %p63
      %p66 = scmp.ne.s32.totalorder %s51, %s65
      %p67 = scmp.eq.s32.totalorder %s20, 0
      %p68 = por %p66, %p67
      %s70 = sadd.s32 %s69, 1
      %p73 = scmp.eq.s32.totalorder %s14, 1
      %p74 = scmp.ne.s32.totalorder %s69, %s71
      %p75 = scmp.eq.s32.totalorder %s14, 0
      %p76 = por %p74, %p75
      %p77 = scmp.ne.s32.totalorder %s69, %s71
      %p78 = scmp.eq.s32.totalorder %s19, 1
      %p79 = por %p77, %p78
      %p80 = scmp.ne.s32.totalorder %s71, %s72
      %p81 = scmp.eq.s32.totalorder %s19, 0
      %p82 = por %p80, %p81
      %p83 = scmp.ne.s32.totalorder %s71, %s72
      %p84 = scmp.eq.s32.totalorder %s20, 1
      %p85 = por %p83, %p84
      %p87 = scmp.ne.s32.totalorder %s72, %s86
      %p88 = scmp.eq.s32.totalorder %s20, 0
      %p89 = por %p87, %p88
      %s91 = sadd.s32 %s90, 1
      %p94 = scmp.eq.s32.totalorder %s14, 1
      %p95 = scmp.ne.s32.totalorder %s90, %s92
      %p96 = scmp.eq.s32.totalorder %s14, 0
      %p97 = por %p95, %p96
      %p98 = scmp.ne.s32.totalorder %s90, %s92
      %p99 = scmp.eq.s32.totalorder %s19, 1
      %p100 = por %p98, %p99
      %p101 = scmp.ne.s32.totalorder %s92, %s93
      %p102 = scmp.eq.s32.totalorder %s19, 0
      %p103 = por %p101, %p102
      %p104 = scmp.ne.s32.totalorder %s92, %s93
      %p105 = scmp.eq.s32.totalorder %s20, 1
      %p106 = por %p104, %p105
      %p108 = scmp.ne.s32.totalorder %s93, %s107
      %p109 = scmp.eq.s32.totalorder %s20, 0
      %p110 = por %p108, %p109
      %s112 = sadd.s32 %s111, 1
      %p115 = scmp.eq.s32.totalorder %s14, 1
      %p116 = scmp.ne.s32.totalorder %s111, %s113
      %p117 = scmp.eq.s32.totalorder %s14, 0
      %p118 = por %p116, %p117
      %p119 = scmp.ne.s32.totalorder %s111, %s113
      %p120 = scmp.eq.s32.totalorder %s19, 1
      %p121 = por %p119, %p120
      %p122 = scmp.ne.s32.totalorder %s113, %s114
      %p123 = scmp.eq.s32.totalorder %s19, 0
      %p124 = por %p122, %p123
      %p125 = scmp.ne.s32.totalorder %s113, %s114
      %p126 = scmp.eq.s32.totalorder %s20, 1
      %p127 = por %p125, %p126
      %p129 = scmp.ne.s32.totalorder %s114, %s128
      %p130 = scmp.eq.s32.totalorder %s20, 0
      %p131 = por %p129, %p130
      %s132 = ssub.s32 %s14, %s21
      %p133 = scmp.eq.s32.totalorder %s132, 0
      %s135 = sadd.s32 %s134, 1
      %s136 = scalar_select %p133, %s134, %s135
      %p139 = pneg %p133
      %p140 = scmp.eq.s32.totalorder %s14, 1
      %p141 = por %p139, %p140
      %p142 = scmp.ne.s32.totalorder %s134, %s137
      %p143 = scmp.eq.s32.totalorder %s14, 0
      %p144 = por %p142, %p143
      %p145 = scmp.ne.s32.totalorder %s134, %s137
      %p146 = scmp.eq.s32.totalorder %s19, 1
      %p147 = por %p145, %p146
      %p148 = scmp.ne.s32.totalorder %s137, %s138
      %p149 = scmp.eq.s32.totalorder %s19, 0
      %p150 = por %p148, %p149
      %p151 = scmp.ne.s32.totalorder %s137, %s138
      %p152 = scmp.eq.s32.totalorder %s20, 1
      %p153 = por %p151, %p152
      %p155 = scmp.ne.s32.totalorder %s138, %s154
      %p156 = scmp.eq.s32.totalorder %s20, 0
      %p157 = por %p155, %p156
      %p158 = scmp.le.s32.totalorder 1, %s14
      %p159 = scmp.lt.s32.totalorder %s14, 3
      %p160 = pnand %p158, %p159
      %p161 = pneg %p160
      // Predicated region
      $region9: #{tpu_custom_call.1} parent=5 // pred_check
        _
      $region10: #{tpu_custom_call.1} parent=5 // pred_check_branch
        %163 = sbr.rel (%p160) target = $region12
      $region11: #{tpu_custom_call.1} parent=5 // pred_region
        %s164 = ssub.s32 %s14, 1
        // Predicated region
        $region13: #{tpu_custom_call.1} parent=11 // pred_check
          %p165 = pneg %p61
        $region14: #{tpu_custom_call.1} parent=11 // pred_check_branch
          %167 = sbr.rel (%p165) target = $region16
        $region15: #{tpu_custom_call.1} parent=11 // pred_region
          _
        $region16: #{tpu_custom_call.1} parent=11 // pred_fallthru
          _
        // Predicated region
        $region17: #{tpu_custom_call.1} parent=11 // pred_check
          %p168 = pneg %p82
        $region18: #{tpu_custom_call.1} parent=11 // pred_check_branch
          %170 = sbr.rel (%p168) target = $region20
        $region19: #{tpu_custom_call.1} parent=11 // pred_region
          _
        $region20: #{tpu_custom_call.1} parent=11 // pred_fallthru
          _
        // Predicated region
        $region21: #{tpu_custom_call.1} parent=11 // pred_check
          %p171 = pneg %p103
        $region22: #{tpu_custom_call.1} parent=11 // pred_check_branch
          %173 = sbr.rel (%p171) target = $region24
        $region23: #{tpu_custom_call.1} parent=11 // pred_region
          _
        $region24: #{tpu_custom_call.1} parent=11 // pred_fallthru
          _
        // Predicated region
        $region25: #{tpu_custom_call.1} parent=11 // pred_check
          %p174 = pneg %p124
        $region26: #{tpu_custom_call.1} parent=11 // pred_check_branch
          %176 = sbr.rel (%p174) target = $region28
        $region27: #{tpu_custom_call.1} parent=11 // pred_region
          _
        $region28: #{tpu_custom_call.1} parent=11 // pred_fallthru
          _
      $region12: #{tpu_custom_call.1} parent=5 // pred_fallthru
        _
      %p177 = scmp.lt.s32.totalorder %s14, 2
      // Predicated region
      $region29: #{tpu_custom_call.1} parent=5 // pred_check
        %p178 = pneg %p177
      $region30: #{tpu_custom_call.1} parent=5 // pred_check_branch
        %180 = sbr.rel (%p178) target = $region32
      $region31: #{tpu_custom_call.1} parent=5 // pred_region
        // Predicated region
        $region33: #{tpu_custom_call.1} parent=31 // pred_check
          %p181 = pneg %p34
        $region34: #{tpu_custom_call.1} parent=31 // pred_check_branch
          %183 = sbr.rel (%p181) target = $region36
        $region35: #{tpu_custom_call.1} parent=31 // pred_region
          %p184 = scmp.lt.s32.totalorder %s14, 1
          %s185 = scalar_select %p184, %s14, 1
          %s186 = smul.addr %s185, 2
          %s187 = smul.addr %s186, 8
          %s188 = scalar_lea.vmem %s0, %s187
        $region36: #{tpu_custom_call.1} parent=31 // pred_fallthru
          _
      $region32: #{tpu_custom_call.1} parent=5 // pred_fallthru
        _
      %p189 = scmp.le.s32.totalorder 1, %s14
      %p190 = scmp.lt.s32.totalorder %s14, 3
      %p191 = pnand %p189, %p190
      %p192 = pneg %p191
      // Predicated region
      $region37: #{tpu_custom_call.1} parent=5 // pred_check
        _
      $region38: #{tpu_custom_call.1} parent=5 // pred_check_branch
        %194 = sbr.rel (%p191) target = $region40
      $region39: #{tpu_custom_call.1} parent=5 // pred_region
        %s195 = ssub.s32 %s14, 1
        %p196 = scmp.lt.s32.totalorder %s19, 1
        %s197 = scalar_select %p196, %s19, 1
        %s198 = smul.addr %s197, 2
        %s199 = smul.addr %s198, 8
        %s200 = scalar_lea.vmem %s0, %s199
        %p201 = pneg %p40
        %p202 = pneg %p37
        %p203 = pneg %p61
        %p204 = pneg %p58
        %p205 = pneg %p82
        %p206 = pneg %p79
        %p207 = pneg %p103
        %p208 = pneg %p100
        %p209 = pneg %p124
        %p210 = pneg %p121
        %p211 = pneg %p150
        %p212 = pneg %p147
        %s213 = sand.u32 %s137, 1
        %s214 = scalar_lea.sflag [#allocation3], %s213
        %s215 = sand.u32 %s137, 1
        %s216 = smul.addr %s215, 16
        %s217 = scalar_lea.vmem [#allocation2], %s216
        %p218 = scmp.lt.s32.totalorder %s19, 1
        %s219 = scalar_select %p218, %s19, 1
        %s220 = smul.addr %s219, 2
        %s221 = smul.addr %s220, 8
        %s222 = scalar_lea.vmem %s0, %s221
        %v224 = vld [vmem:[%s222] sm:$0xff]
        %v225 = vld [vmem:[%s222 + $0x8] sm:$0xff]
        %v226 = vpack.c.bf16 %v224, %v224
        %v227 = vpack.c.bf16 %v225, %v225
        %v228 = vld [vmem:[%s1] sm:$0xff]
        %v229 = vld [vmem:[%s1 + $0x8] sm:$0xff]
        %v230 = vld [vmem:[%s1 + $0x10] sm:$0xff]
        %v231 = vld [vmem:[%s1 + $0x18] sm:$0xff]
        %v232 = vld [vmem:[%s1 + $0x20] sm:$0xff]
        %v233 = vld [vmem:[%s1 + $0x28] sm:$0xff]
        %v234 = vld [vmem:[%s1 + $0x30] sm:$0xff]
        %v235 = vld [vmem:[%s1 + $0x38] sm:$0xff]
        %v236 = vld [vmem:[%s1 + $0x40] sm:$0xff]
        %v237 = vld [vmem:[%s1 + $0x48] sm:$0xff]
        %v238 = vld [vmem:[%s1 + $0x50] sm:$0xff]
        %v239 = vld [vmem:[%s1 + $0x58] sm:$0xff]
        %v240 = vld [vmem:[%s1 + $0x60] sm:$0xff]
        %v241 = vld [vmem:[%s1 + $0x68] sm:$0xff]
        %v242 = vld [vmem:[%s1 + $0x70] sm:$0xff]
        %v243 = vld [vmem:[%s1 + $0x78] sm:$0xff]
        %v244 = vld [vmem:[%s1 + $0x80] sm:$0xff]
        %v245 = vld [vmem:[%s1 + $0x88] sm:$0xff]
        %v246 = vld [vmem:[%s1 + $0x90] sm:$0xff]
        %v247 = vld [vmem:[%s1 + $0x98] sm:$0xff]
        %v248 = vld [vmem:[%s1 + $0xa0] sm:$0xff]
        %v249 = vld [vmem:[%s1 + $0xa8] sm:$0xff]
        %v250 = vld [vmem:[%s1 + $0xb0] sm:$0xff]
        %v251 = vld [vmem:[%s1 + $0xb8] sm:$0xff]
        %v252 = vld [vmem:[%s1 + $0xc0] sm:$0xff]
        %v253 = vld [vmem:[%s1 + $0xc8] sm:$0xff]
        %v254 = vld [vmem:[%s1 + $0xd0] sm:$0xff]
        %v255 = vld [vmem:[%s1 + $0xd8] sm:$0xff]
        %v256 = vld [vmem:[%s1 + $0xe0] sm:$0xff]
        %v257 = vld [vmem:[%s1 + $0xe8] sm:$0xff]
        %v258 = vld [vmem:[%s1 + $0xf0] sm:$0xff]
        %v259 = vld [vmem:[%s1 + $0xf8] sm:$0xff]
        %v260 = vld [vmem:[%s1 + $0x100] sm:$0xff]
        %v261 = vld [vmem:[%s1 + $0x108] sm:$0xff]
        %v262 = vld [vmem:[%s1 + $0x110] sm:$0xff]
        %v263 = vld [vmem:[%s1 + $0x118] sm:$0xff]
        %v264 = vld [vmem:[%s1 + $0x120] sm:$0xff]
        %v265 = vld [vmem:[%s1 + $0x128] sm:$0xff]
        %v266 = vld [vmem:[%s1 + $0x130] sm:$0xff]
        %v267 = vld [vmem:[%s1 + $0x138] sm:$0xff]
        %v268 = vld [vmem:[%s1 + $0x140] sm:$0xff]
        %v269 = vld [vmem:[%s1 + $0x148] sm:$0xff]
        %v270 = vld [vmem:[%s1 + $0x150] sm:$0xff]
        %v271 = vld [vmem:[%s1 + $0x158] sm:$0xff]
        %v272 = vld [vmem:[%s1 + $0x160] sm:$0xff]
        %v273 = vld [vmem:[%s1 + $0x168] sm:$0xff]
        %v274 = vld [vmem:[%s1 + $0x170] sm:$0xff]
        %v275 = vld [vmem:[%s1 + $0x178] sm:$0xff]
        %v276 = vld [vmem:[%s1 + $0x180] sm:$0xff]
        %v277 = vld [vmem:[%s1 + $0x188] sm:$0xff]
        %v278 = vld [vmem:[%s1 + $0x190] sm:$0xff]
        %v279 = vld [vmem:[%s1 + $0x198] sm:$0xff]
        %v280 = vld [vmem:[%s1 + $0x1a0] sm:$0xff]
        %v281 = vld [vmem:[%s1 + $0x1a8] sm:$0xff]
        %v282 = vld [vmem:[%s1 + $0x1b0] sm:$0xff]
        %v283 = vld [vmem:[%s1 + $0x1b8] sm:$0xff]
        %v284 = vld [vmem:[%s1 + $0x1c0] sm:$0xff]
        %v285 = vld [vmem:[%s1 + $0x1c8] sm:$0xff]
        %v286 = vld [vmem:[%s1 + $0x1d0] sm:$0xff]
        %v287 = vld [vmem:[%s1 + $0x1d8] sm:$0xff]
        %v288 = vld [vmem:[%s1 + $0x1e0] sm:$0xff]
        %v289 = vld [vmem:[%s1 + $0x1e8] sm:$0xff]
        %v290 = vld [vmem:[%s1 + $0x1f0] sm:$0xff]
        %v291 = vld [vmem:[%s1 + $0x1f8] sm:$0xff]
        %v292 = vld [vmem:[%s1 + $0x200] sm:$0xff]
        %v293 = vld [vmem:[%s1 + $0x208] sm:$0xff]
        %v294 = vld [vmem:[%s1 + $0x210] sm:$0xff]
        %v295 = vld [vmem:[%s1 + $0x218] sm:$0xff]
        %v296 = vld [vmem:[%s1 + $0x220] sm:$0xff]
        %v297 = vld [vmem:[%s1 + $0x228] sm:$0xff]
        %v298 = vld [vmem:[%s1 + $0x230] sm:$0xff]
        %v299 = vld [vmem:[%s1 + $0x238] sm:$0xff]
        %v300 = vld [vmem:[%s2] sm:$0x3f]
        %v302 = vlaneseq
        %v303 = vshrl.u32 %v302, 7
        %v304 = vsub.s32 0, %v303
        %v305 = vrot.slane %v300, %v304
        %v306 = vlaneseq
        %v307 = vshrl.u32 %v306, 7
        %v308 = vsub.s32 1, %v307
        %v309 = vrot.slane %v300, %v308
        %v310 = vlaneseq
        %v311 = vshrl.u32 %v310, 7
        %v312 = vsub.s32 2, %v311
        %v313 = vrot.slane %v300, %v312
        %v314 = vlaneseq
        %v315 = vshrl.u32 %v314, 7
        %v316 = vsub.s32 3, %v315
        %v317 = vrot.slane %v300, %v316
        %v318 = vlaneseq
        %v319 = vshrl.u32 %v318, 7
        %v320 = vsub.s32 4, %v319
        %v321 = vrot.slane %v300, %v320
        %v322 = vlaneseq
        %v323 = vshrl.u32 %v322, 7
        %v324 = vsub.s32 5, %v323
        %v325 = vrot.slane %v300, %v324
        %v404 = vunpack.c.l.b16 %v228
        %v405 = vunpack.c.h.b16 %v228
        %v406 = vunpack.c.l.b16 %v229
        %v407 = vunpack.c.h.b16 %v229
        %v408 = vunpack.c.l.b16 %v230
        %v409 = vunpack.c.h.b16 %v230
        %v410 = vunpack.c.l.b16 %v231
        %v411 = vunpack.c.h.b16 %v231
        %v412 = vunpack.c.l.b16 %v232
        %v413 = vunpack.c.h.b16 %v232
        %v414 = vunpack.c.l.b16 %v233
        %v415 = vunpack.c.h.b16 %v233
        %v416 = vunpack.c.l.b16 %v234
        %v417 = vunpack.c.h.b16 %v234
        %v418 = vunpack.c.l.b16 %v235
        %v419 = vunpack.c.h.b16 %v235
        %v420 = vunpack.c.l.b16 %v236
        %v421 = vunpack.c.h.b16 %v236
        %v422 = vunpack.c.l.b16 %v237
        %v423 = vunpack.c.h.b16 %v237
        %v424 = vunpack.c.l.b16 %v238
        %v425 = vunpack.c.h.b16 %v238
        %v426 = vunpack.c.l.b16 %v239
        %v427 = vunpack.c.h.b16 %v239
        %v428 = vunpack.c.l.b16 %v240
        %v429 = vunpack.c.h.b16 %v240
        %v430 = vunpack.c.l.b16 %v241
        %v431 = vunpack.c.h.b16 %v241
        %v432 = vunpack.c.l.b16 %v242
        %v433 = vunpack.c.h.b16 %v242
        %v434 = vunpack.c.l.b16 %v243
        %v435 = vunpack.c.h.b16 %v243
        %v436 = vunpack.c.l.b16 %v244
        %v437 = vunpack.c.h.b16 %v244
        %v438 = vunpack.c.l.b16 %v245
        %v439 = vunpack.c.h.b16 %v245
        %v440 = vunpack.c.l.b16 %v246
        %v441 = vunpack.c.h.b16 %v246
        %v442 = vunpack.c.l.b16 %v247
        %v443 = vunpack.c.h.b16 %v247
        %v444 = vunpack.c.l.b16 %v248
        %v445 = vunpack.c.h.b16 %v248
        %v446 = vunpack.c.l.b16 %v249
        %v447 = vunpack.c.h.b16 %v249
        %v448 = vunpack.c.l.b16 %v250
        %v449 = vunpack.c.h.b16 %v250
        %v450 = vunpack.c.l.b16 %v251
        %v451 = vunpack.c.h.b16 %v251
        %v452 = vunpack.c.l.b16 %v252
        %v453 = vunpack.c.h.b16 %v252
        %v454 = vunpack.c.l.b16 %v253
        %v455 = vunpack.c.h.b16 %v253
        %v456 = vunpack.c.l.b16 %v254
        %v457 = vunpack.c.h.b16 %v254
        %v458 = vunpack.c.l.b16 %v255
        %v459 = vunpack.c.h.b16 %v255
        %v460 = vunpack.c.l.b16 %v256
        %v461 = vunpack.c.h.b16 %v256
        %v462 = vunpack.c.l.b16 %v257
        %v463 = vunpack.c.h.b16 %v257
        %v464 = vunpack.c.l.b16 %v258
        %v465 = vunpack.c.h.b16 %v258
        %v466 = vunpack.c.l.b16 %v259
        %v467 = vunpack.c.h.b16 %v259
        %v468 = vunpack.c.l.b16 %v260
        %v469 = vunpack.c.h.b16 %v260
        %v470 = vunpack.c.l.b16 %v261
        %v471 = vunpack.c.h.b16 %v261
        %v472 = vunpack.c.l.b16 %v262
        %v473 = vunpack.c.h.b16 %v262
        %v474 = vunpack.c.l.b16 %v263
        %v475 = vunpack.c.h.b16 %v263
        %v476 = vunpack.c.l.b16 %v264
        %v477 = vunpack.c.h.b16 %v264
        %v478 = vunpack.c.l.b16 %v265
        %v479 = vunpack.c.h.b16 %v265
        %v480 = vunpack.c.l.b16 %v266
        %v481 = vunpack.c.h.b16 %v266
        %v482 = vunpack.c.l.b16 %v267
        %v483 = vunpack.c.h.b16 %v267
        %v484 = vunpack.c.l.b16 %v268
        %v485 = vunpack.c.h.b16 %v268
        %v486 = vunpack.c.l.b16 %v269
        %v487 = vunpack.c.h.b16 %v269
        %v488 = vunpack.c.l.b16 %v270
        %v489 = vunpack.c.h.b16 %v270
        %v490 = vunpack.c.l.b16 %v271
        %v491 = vunpack.c.h.b16 %v271
        %v492 = vunpack.c.l.b16 %v272
        %v493 = vunpack.c.h.b16 %v272
        %v494 = vunpack.c.l.b16 %v273
        %v495 = vunpack.c.h.b16 %v273
        %v496 = vunpack.c.l.b16 %v274
        %v497 = vunpack.c.h.b16 %v274
        %v498 = vunpack.c.l.b16 %v275
        %v499 = vunpack.c.h.b16 %v275
        %v500 = vunpack.c.l.b16 %v276
        %v501 = vunpack.c.h.b16 %v276
        %v502 = vunpack.c.l.b16 %v277
        %v503 = vunpack.c.h.b16 %v277
        %v504 = vunpack.c.l.b16 %v278
        %v505 = vunpack.c.h.b16 %v278
        %v506 = vunpack.c.l.b16 %v279
        %v507 = vunpack.c.h.b16 %v279
        %v508 = vunpack.c.l.b16 %v280
        %v509 = vunpack.c.h.b16 %v280
        %v510 = vunpack.c.l.b16 %v281
        %v511 = vunpack.c.h.b16 %v281
        %v512 = vunpack.c.l.b16 %v282
        %v513 = vunpack.c.h.b16 %v282
        %v514 = vunpack.c.l.b16 %v283
        %v515 = vunpack.c.h.b16 %v283
        %v516 = vunpack.c.l.b16 %v284
        %v517 = vunpack.c.h.b16 %v284
        %v518 = vunpack.c.l.b16 %v285
        %v519 = vunpack.c.h.b16 %v285
        %v520 = vunpack.c.l.b16 %v286
        %v521 = vunpack.c.h.b16 %v286
        %v522 = vunpack.c.l.b16 %v287
        %v523 = vunpack.c.h.b16 %v287
        %v524 = vunpack.c.l.b16 %v288
        %v525 = vunpack.c.h.b16 %v288
        %v526 = vunpack.c.l.b16 %v289
        %v527 = vunpack.c.h.b16 %v289
        %v528 = vunpack.c.l.b16 %v290
        %v529 = vunpack.c.h.b16 %v290
        %v530 = vunpack.c.l.b16 %v291
        %v531 = vunpack.c.h.b16 %v291
        %v532 = vunpack.c.l.b16 %v292
        %v533 = vunpack.c.h.b16 %v292
        %v534 = vunpack.c.l.b16 %v293
        %v535 = vunpack.c.h.b16 %v293
        %v536 = vunpack.c.l.b16 %v294
        %v537 = vunpack.c.h.b16 %v294
        %v538 = vunpack.c.l.b16 %v295
        %v539 = vunpack.c.h.b16 %v295
        %v540 = vunpack.c.l.b16 %v296
        %v541 = vunpack.c.h.b16 %v296
        %v542 = vunpack.c.l.b16 %v297
        %v543 = vunpack.c.h.b16 %v297
        %v544 = vunpack.c.l.b16 %v298
        %v545 = vunpack.c.h.b16 %v298
        %v546 = vunpack.c.l.b16 %v299
        %v547 = vunpack.c.h.b16 %v299
        %v548 = vpack.c.b16 %v410, %v404
        %v549 = vpack.c.b16 %v411, %v405
        %v550 = vpack.c.b16 %v412, %v406
        %v551 = vpack.c.b16 %v413, %v407
        %v552 = vpack.c.b16 %v414, %v408
        %v553 = vpack.c.b16 %v415, %v409
        %v554 = vpack.c.b16 %v422, %v416
        %v555 = vpack.c.b16 %v423, %v417
        %v556 = vpack.c.b16 %v424, %v418
        %v557 = vpack.c.b16 %v425, %v419
        %v558 = vpack.c.b16 %v426, %v420
        %v559 = vpack.c.b16 %v427, %v421
        %v560 = vpack.c.b16 %v434, %v428
        %v561 = vpack.c.b16 %v435, %v429
        %v562 = vpack.c.b16 %v436, %v430
        %v563 = vpack.c.b16 %v437, %v431
        %v564 = vpack.c.b16 %v438, %v432
        %v565 = vpack.c.b16 %v439, %v433
        %v566 = vpack.c.b16 %v446, %v440
        %v567 = vpack.c.b16 %v447, %v441
        %v568 = vpack.c.b16 %v448, %v442
        %v569 = vpack.c.b16 %v449, %v443
        %v570 = vpack.c.b16 %v450, %v444
        %v571 = vpack.c.b16 %v451, %v445
        %v572 = vpack.c.b16 %v458, %v452
        %v573 = vpack.c.b16 %v459, %v453
        %v574 = vpack.c.b16 %v460, %v454
        %v575 = vpack.c.b16 %v461, %v455
        %v576 = vpack.c.b16 %v462, %v456
        %v577 = vpack.c.b16 %v463, %v457
        %v578 = vpack.c.b16 %v470, %v464
        %v579 = vpack.c.b16 %v471, %v465
        %v580 = vpack.c.b16 %v472, %v466
        %v581 = vpack.c.b16 %v473, %v467
        %v582 = vpack.c.b16 %v474, %v468
        %v583 = vpack.c.b16 %v475, %v469
        %v584 = vpack.c.b16 %v482, %v476
        %v585 = vpack.c.b16 %v483, %v477
        %v586 = vpack.c.b16 %v484, %v478
        %v587 = vpack.c.b16 %v485, %v479
        %v588 = vpack.c.b16 %v486, %v480
        %v589 = vpack.c.b16 %v487, %v481
        %v590 = vpack.c.b16 %v494, %v488
        %v591 = vpack.c.b16 %v495, %v489
        %v592 = vpack.c.b16 %v496, %v490
        %v593 = vpack.c.b16 %v497, %v491
        %v594 = vpack.c.b16 %v498, %v492
        %v595 = vpack.c.b16 %v499, %v493
        %v596 = vpack.c.b16 %v506, %v500
        %v597 = vpack.c.b16 %v507, %v501
        %v598 = vpack.c.b16 %v508, %v502
        %v599 = vpack.c.b16 %v509, %v503
        %v600 = vpack.c.b16 %v510, %v504
        %v601 = vpack.c.b16 %v511, %v505
        %v602 = vpack.c.b16 %v518, %v512
        %v603 = vpack.c.b16 %v519, %v513
        %v604 = vpack.c.b16 %v520, %v514
        %v605 = vpack.c.b16 %v521, %v515
        %v606 = vpack.c.b16 %v522, %v516
        %v607 = vpack.c.b16 %v523, %v517
        %v608 = vpack.c.b16 %v530, %v524
        %v609 = vpack.c.b16 %v531, %v525
        %v610 = vpack.c.b16 %v532, %v526
        %v611 = vpack.c.b16 %v533, %v527
        %v612 = vpack.c.b16 %v534, %v528
        %v613 = vpack.c.b16 %v535, %v529
        %v614 = vpack.c.b16 %v542, %v536
        %v615 = vpack.c.b16 %v543, %v537
        %v616 = vpack.c.b16 %v544, %v538
        %v617 = vpack.c.b16 %v545, %v539
        %v618 = vpack.c.b16 %v546, %v540
        %v619 = vpack.c.b16 %v547, %v541
        %vm692 = vcmask 523264
        %v694 = vsel %vm692, %v227, 0
        %696 = vmatprep.subr.bf16.mxu0 %v549
        %697 = vmatpush1.bf16.msra.mxu0 %v548
        %698 = vmatprep.subr.bf16.mxu0 %v555
        %699 = vmatpush1.bf16.msra.mxu0 %v554
        %700 = vmatprep.subr.bf16.mxu0 %v561
        %701 = vmatpush1.bf16.msra.mxu0 %v560
        %702 = vmatprep.subr.bf16.mxu0 %v567
        %703 = vmatpush1.bf16.msra.mxu0 %v566
        %704 = vmatprep.subr.bf16.mxu0 %v573
        %705 = vmatpush1.bf16.msra.mxu0 %v572
        %706 = vmatprep.subr.bf16.mxu0 %v579
        %707 = vmatpush1.bf16.msra.mxu0 %v578
        %708 = vmatprep.subr.bf16.mxu0 %v585
        %709 = vmatpush1.bf16.msra.mxu0 %v584
        %710 = vmatprep.subr.bf16.mxu0 %v591
        %711 = vmatpush1.bf16.msra.mxu0 %v590
        %712 = vmatprep.subr.bf16.mxu0 %v597
        %713 = vmatpush1.bf16.msra.mxu0 %v596
        %714 = vmatprep.subr.bf16.mxu0 %v603
        %715 = vmatpush1.bf16.msra.mxu0 %v602
        %716 = vmatprep.subr.bf16.mxu0 %v609
        %717 = vmatpush1.bf16.msra.mxu0 %v608
        %718 = vmatprep.subr.bf16.mxu0 %v615
        %719 = vmatpush1.bf16.msra.mxu0 %v614
        %720 = vmatprep.subr.bf16.mxu0 0
        %721 = vmatpush1.bf16.msra.mxu0 0
        %722 = vmatprep.subr.bf16.mxu0 0
        %723 = vmatpush1.bf16.msra.mxu0 0
        %724 = vmatprep.subr.bf16.mxu0 0
        %725 = vmatpush1.bf16.msra.mxu0 0
        %726 = vmatprep.subr.bf16.mxu0 0
        %727 = vmatpush1.bf16.msra.mxu0 0
        %728 = vmatprep.mubr.bf16.mxu0 %v694
        %729 = vmatmul.mubr.bf16.gmra.mrb[0].mxu0 %v226
        %v730 = vpop.f32.mrb[0].mxu0
        %v731 = vadd.f32 %v305, %v730
        %v732 = vpop.f32.mrb[0].mxu0
        %v733 = vadd.f32 %v309, %v732
        %v734 = vpop.f32.mrb[0].mxu0
        %v735 = vpop.f32.mrb[0].mxu0
        %736 = vdwg.mxu0
        %737 = vmatprep.subr.bf16.mxu0 %v551
        %738 = vmatpush1.bf16.msra.mxu0 %v550
        %739 = vmatprep.subr.bf16.mxu0 %v557
        %740 = vmatpush1.bf16.msra.mxu0 %v556
        %741 = vmatprep.subr.bf16.mxu0 %v563
        %742 = vmatpush1.bf16.msra.mxu0 %v562
        %743 = vmatprep.subr.bf16.mxu0 %v569
        %744 = vmatpush1.bf16.msra.mxu0 %v568
        %745 = vmatprep.subr.bf16.mxu0 %v575
        %746 = vmatpush1.bf16.msra.mxu0 %v574
        %747 = vmatprep.subr.bf16.mxu0 %v581
        %748 = vmatpush1.bf16.msra.mxu0 %v580
        %749 = vmatprep.subr.bf16.mxu0 %v587
        %750 = vmatpush1.bf16.msra.mxu0 %v586
        %751 = vmatprep.subr.bf16.mxu0 %v593
        %752 = vmatpush1.bf16.msra.mxu0 %v592
        %753 = vmatprep.subr.bf16.mxu0 %v599
        %754 = vmatpush1.bf16.msra.mxu0 %v598
        %755 = vmatprep.subr.bf16.mxu0 %v605
        %756 = vmatpush1.bf16.msra.mxu0 %v604
        %757 = vmatprep.subr.bf16.mxu0 %v611
        %758 = vmatpush1.bf16.msra.mxu0 %v610
        %759 = vmatprep.subr.bf16.mxu0 %v617
        %760 = vmatpush1.bf16.msra.mxu0 %v616
        %761 = vmatprep.subr.bf16.mxu0 0
        %762 = vmatpush1.bf16.msra.mxu0 0
        %763 = vmatprep.subr.bf16.mxu0 0
        %764 = vmatpush1.bf16.msra.mxu0 0
        %765 = vmatprep.subr.bf16.mxu0 0
        %766 = vmatpush1.bf16.msra.mxu0 0
        %767 = vmatprep.subr.bf16.mxu0 0
        %768 = vmatpush1.bf16.msra.mxu0 0
        %769 = vmatprep.mubr.bf16.mxu0 %v694
        %770 = vmatmul.mubr.bf16.gmra.mrb[0].mxu0 %v226
        %v771 = vpop.f32.mrb[0].mxu0
        %v772 = vadd.f32 %v313, %v771
        %v773 = vpop.f32.mrb[0].mxu0
        %v774 = vadd.f32 %v317, %v773
        %v775 = vpop.f32.mrb[0].mxu0
        %v776 = vpop.f32.mrb[0].mxu0
        %777 = vdwg.mxu0
        %778 = vmatprep.subr.bf16.mxu0 %v553
        %779 = vmatpush1.bf16.msra.mxu0 %v552
        %780 = vmatprep.subr.bf16.mxu0 %v559
        %781 = vmatpush1.bf16.msra.mxu0 %v558
        %782 = vmatprep.subr.bf16.mxu0 %v565
        %783 = vmatpush1.bf16.msra.mxu0 %v564
        %784 = vmatprep.subr.bf16.mxu0 %v571
        %785 = vmatpush1.bf16.msra.mxu0 %v570
        %786 = vmatprep.subr.bf16.mxu0 %v577
        %787 = vmatpush1.bf16.msra.mxu0 %v576
        %788 = vmatprep.subr.bf16.mxu0 %v583
        %789 = vmatpush1.bf16.msra.mxu0 %v582
        %790 = vmatprep.subr.bf16.mxu0 %v589
        %791 = vmatpush1.bf16.msra.mxu0 %v588
        %792 = vmatprep.subr.bf16.mxu0 %v595
        %793 = vmatpush1.bf16.msra.mxu0 %v594
        %794 = vmatprep.subr.bf16.mxu0 %v601
        %795 = vmatpush1.bf16.msra.mxu0 %v600
        %796 = vmatprep.subr.bf16.mxu0 %v607
        %797 = vmatpush1.bf16.msra.mxu0 %v606
        %798 = vmatprep.subr.bf16.mxu0 %v613
        %799 = vmatpush1.bf16.msra.mxu0 %v612
        %800 = vmatprep.subr.bf16.mxu0 %v619
        %801 = vmatpush1.bf16.msra.mxu0 %v618
        %802 = vmatprep.subr.bf16.mxu0 0
        %803 = vmatpush1.bf16.msra.mxu0 0
        %804 = vmatprep.subr.bf16.mxu0 0
        %805 = vmatpush1.bf16.msra.mxu0 0
        %806 = vmatprep.subr.bf16.mxu0 0
        %807 = vmatpush1.bf16.msra.mxu0 0
        %808 = vmatprep.subr.bf16.mxu0 0
        %809 = vmatpush1.bf16.msra.mxu0 0
        %810 = vmatprep.mubr.bf16.mxu0 %v694
        %811 = vmatmul.mubr.bf16.gmra.mrb[0].mxu0 %v226
        %v812 = vpop.f32.mrb[0].mxu0
        %v813 = vadd.f32 %v321, %v812
        %v814 = vpop.f32.mrb[0].mxu0
        %v815 = vadd.f32 %v325, %v814
        %v816 = vpop.f32.mrb[0].mxu0
        %v817 = vpop.f32.mrb[0].mxu0
        %818 = vdwg.mxu0
        %v819 = vmax.f32 %v731, 0.0
        %v820 = vmax.f32 %v733, 0.0
        %v821 = vmax.f32 %v772, 0.0
        %v822 = vmax.f32 %v774, 0.0
        %v823 = vmax.f32 %v813, 0.0
        %v824 = vmax.f32 %v815, 0.0
        %v825 = vpack.c.bf16 %v819, %v819
        %v826 = vpack.c.bf16 %v820, %v820
        %v827 = vpack.c.bf16 %v821, %v821
        %v828 = vpack.c.bf16 %v822, %v822
        %v829 = vpack.c.bf16 %v823, %v823
        %v830 = vpack.c.bf16 %v824, %v824
        %v831 = vld [vmem:[%s3] sm:$0xff]
        %v832 = vld [vmem:[%s3 + $0x8] sm:$0xff]
        %v833 = vld [vmem:[%s3 + $0x10] sm:$0xff]
        %v834 = vld [vmem:[%s3 + $0x18] sm:$0xff]
        %v835 = vld [vmem:[%s3 + $0x20] sm:$0xff]
        %v836 = vld [vmem:[%s3 + $0x28] sm:$0xff]
        %v837 = vld [vmem:[%s3 + $0x30] sm:$0xff]
        %v838 = vld [vmem:[%s3 + $0x38] sm:$0xff]
        %v839 = vld [vmem:[%s3 + $0x40] sm:$0xff]
        %v840 = vld [vmem:[%s3 + $0x48] sm:$0xff]
        %v841 = vld [vmem:[%s3 + $0x50] sm:$0xff]
        %v842 = vld [vmem:[%s3 + $0x58] sm:$0xff]
        %v843 = vld [vmem:[%s3 + $0x60] sm:$0xff]
        %v844 = vld [vmem:[%s3 + $0x68] sm:$0xff]
        %v845 = vld [vmem:[%s3 + $0x70] sm:$0xff]
        %v846 = vld [vmem:[%s3 + $0x78] sm:$0xff]
        %v847 = vld [vmem:[%s3 + $0x80] sm:$0xff]
        %v848 = vld [vmem:[%s3 + $0x88] sm:$0xff]
        %v849 = vld [vmem:[%s3 + $0x90] sm:$0xff]
        %v850 = vld [vmem:[%s3 + $0x98] sm:$0xff]
        %v851 = vld [vmem:[%s3 + $0xa0] sm:$0xff]
        %v852 = vld [vmem:[%s3 + $0xa8] sm:$0xff]
        %v853 = vld [vmem:[%s3 + $0xb0] sm:$0xff]
        %v854 = vld [vmem:[%s3 + $0xb8] sm:$0xff]
        %v855 = vld [vmem:[%s3 + $0xc0] sm:$0xff]
        %v856 = vld [vmem:[%s3 + $0xc8] sm:$0xff]
        %v857 = vld [vmem:[%s3 + $0xd0] sm:$0xff]
        %v858 = vld [vmem:[%s3 + $0xd8] sm:$0xff]
        %v859 = vld [vmem:[%s3 + $0xe0] sm:$0xff]
        %v860 = vld [vmem:[%s3 + $0xe8] sm:$0xff]
        %v861 = vld [vmem:[%s3 + $0xf0] sm:$0xff]
        %v862 = vld [vmem:[%s3 + $0xf8] sm:$0xff]
        %v863 = vld [vmem:[%s3 + $0x100] sm:$0xff]
        %v864 = vld [vmem:[%s3 + $0x108] sm:$0xff]
        %v865 = vld [vmem:[%s3 + $0x110] sm:$0xff]
        %v866 = vld [vmem:[%s3 + $0x118] sm:$0xff]
        %v867 = vld [vmem:[%s3 + $0x120] sm:$0xff]
        %v868 = vld [vmem:[%s3 + $0x128] sm:$0xff]
        %v869 = vld [vmem:[%s3 + $0x130] sm:$0xff]
        %v870 = vld [vmem:[%s3 + $0x138] sm:$0xff]
        %v871 = vld [vmem:[%s3 + $0x140] sm:$0xff]
        %v872 = vld [vmem:[%s3 + $0x148] sm:$0xff]
        %v873 = vld [vmem:[%s3 + $0x150] sm:$0xff]
        %v874 = vld [vmem:[%s3 + $0x158] sm:$0xff]
        %v875 = vld [vmem:[%s3 + $0x160] sm:$0xff]
        %v876 = vld [vmem:[%s3 + $0x168] sm:$0xff]
        %v877 = vld [vmem:[%s3 + $0x170] sm:$0xff]
        %v878 = vld [vmem:[%s3 + $0x178] sm:$0xff]
        %v879 = vld [vmem:[%s3 + $0x180] sm:$0xff]
        %v880 = vld [vmem:[%s3 + $0x188] sm:$0xff]
        %v881 = vld [vmem:[%s3 + $0x190] sm:$0xff]
        %v882 = vld [vmem:[%s3 + $0x198] sm:$0xff]
        %v883 = vld [vmem:[%s3 + $0x1a0] sm:$0xff]
        %v884 = vld [vmem:[%s3 + $0x1a8] sm:$0xff]
        %v885 = vld [vmem:[%s3 + $0x1b0] sm:$0xff]
        %v886 = vld [vmem:[%s3 + $0x1b8] sm:$0xff]
        %v887 = vld [vmem:[%s3 + $0x1c0] sm:$0xff]
        %v888 = vld [vmem:[%s3 + $0x1c8] sm:$0xff]
        %v889 = vld [vmem:[%s3 + $0x1d0] sm:$0xff]
        %v890 = vld [vmem:[%s3 + $0x1d8] sm:$0xff]
        %v891 = vld [vmem:[%s3 + $0x1e0] sm:$0xff]
        %v892 = vld [vmem:[%s3 + $0x1e8] sm:$0xff]
        %v893 = vld [vmem:[%s3 + $0x1f0] sm:$0xff]
        %v894 = vld [vmem:[%s3 + $0x1f8] sm:$0xff]
        %v895 = vld [vmem:[%s3 + $0x200] sm:$0xff]
        %v896 = vld [vmem:[%s3 + $0x208] sm:$0xff]
        %v897 = vld [vmem:[%s3 + $0x210] sm:$0xff]
        %v898 = vld [vmem:[%s3 + $0x218] sm:$0xff]
        %v899 = vld [vmem:[%s3 + $0x220] sm:$0xff]
        %v900 = vld [vmem:[%s3 + $0x228] sm:$0xff]
        %v901 = vld [vmem:[%s3 + $0x230] sm:$0xff]
        %v902 = vld [vmem:[%s3 + $0x238] sm:$0xff]
        %v903 = vld [vmem:[%s3 + $0x240] sm:$0xff]
        %v904 = vld [vmem:[%s3 + $0x248] sm:$0xff]
        %v905 = vld [vmem:[%s3 + $0x250] sm:$0xff]
        %v906 = vld [vmem:[%s3 + $0x258] sm:$0xff]
        %v907 = vld [vmem:[%s3 + $0x260] sm:$0xff]
        %v908 = vld [vmem:[%s3 + $0x268] sm:$0xff]
        %v909 = vld [vmem:[%s3 + $0x270] sm:$0xff]
        %v910 = vld [vmem:[%s3 + $0x278] sm:$0xff]
        %v911 = vld [vmem:[%s3 + $0x280] sm:$0xff]
        %v912 = vld [vmem:[%s3 + $0x288] sm:$0xff]
        %v913 = vld [vmem:[%s3 + $0x290] sm:$0xff]
        %v914 = vld [vmem:[%s3 + $0x298] sm:$0xff]
        %v915 = vld [vmem:[%s3 + $0x2a0] sm:$0xff]
        %v916 = vld [vmem:[%s3 + $0x2a8] sm:$0xff]
        %v917 = vld [vmem:[%s3 + $0x2b0] sm:$0xff]
        %v918 = vld [vmem:[%s3 + $0x2b8] sm:$0xff]
        %v919 = vld [vmem:[%s3 + $0x2c0] sm:$0xff]
        %v920 = vld [vmem:[%s3 + $0x2c8] sm:$0xff]
        %v921 = vld [vmem:[%s3 + $0x2d0] sm:$0xff]
        %v922 = vld [vmem:[%s3 + $0x2d8] sm:$0xff]
        %v923 = vld [vmem:[%s3 + $0x2e0] sm:$0xff]
        %v924 = vld [vmem:[%s3 + $0x2e8] sm:$0xff]
        %v925 = vld [vmem:[%s3 + $0x2f0] sm:$0xff]
        %v926 = vld [vmem:[%s3 + $0x2f8] sm:$0xff]
        %v927 = vld [vmem:[%s4] sm:$0x3]
        %v929 = vlaneseq
        %v930 = vshrl.u32 %v929, 7
        %v931 = vsub.s32 0, %v930
        %v932 = vrot.slane %v927, %v931
        %v933 = vlaneseq
        %v934 = vshrl.u32 %v933, 7
        %v935 = vsub.s32 1, %v934
        %v936 = vrot.slane %v927, %v935
        %v1035 = vunpack.c.l.b16 %v831
        %v1036 = vunpack.c.h.b16 %v831
        %v1037 = vunpack.c.l.b16 %v832
        %v1038 = vunpack.c.h.b16 %v832
        %v1039 = vunpack.c.l.b16 %v833
        %v1040 = vunpack.c.h.b16 %v833
        %v1041 = vunpack.c.l.b16 %v834
        %v1042 = vunpack.c.h.b16 %v834
        %v1043 = vunpack.c.l.b16 %v835
        %v1044 = vunpack.c.h.b16 %v835
        %v1045 = vunpack.c.l.b16 %v836
        %v1046 = vunpack.c.h.b16 %v836
        %v1047 = vunpack.c.l.b16 %v837
        %v1048 = vunpack.c.h.b16 %v837
        %v1049 = vunpack.c.l.b16 %v838
        %v1050 = vunpack.c.h.b16 %v838
        %v1051 = vunpack.c.l.b16 %v839
        %v1052 = vunpack.c.h.b16 %v839
        %v1053 = vunpack.c.l.b16 %v840
        %v1054 = vunpack.c.h.b16 %v840
        %v1055 = vunpack.c.l.b16 %v841
        %v1056 = vunpack.c.h.b16 %v841
        %v1057 = vunpack.c.l.b16 %v842
        %v1058 = vunpack.c.h.b16 %v842
        %v1059 = vunpack.c.l.b16 %v843
        %v1060 = vunpack.c.h.b16 %v843
        %v1061 = vunpack.c.l.b16 %v844
        %v1062 = vunpack.c.h.b16 %v844
        %v1063 = vunpack.c.l.b16 %v845
        %v1064 = vunpack.c.h.b16 %v845
        %v1065 = vunpack.c.l.b16 %v846
        %v1066 = vunpack.c.h.b16 %v846
        %v1067 = vunpack.c.l.b16 %v847
        %v1068 = vunpack.c.h.b16 %v847
        %v1069 = vunpack.c.l.b16 %v848
        %v1070 = vunpack.c.h.b16 %v848
        %v1071 = vunpack.c.l.b16 %v849
        %v1072 = vunpack.c.h.b16 %v849
        %v1073 = vunpack.c.l.b16 %v850
        %v1074 = vunpack.c.h.b16 %v850
        %v1075 = vunpack.c.l.b16 %v851
        %v1076 = vunpack.c.h.b16 %v851
        %v1077 = vunpack.c.l.b16 %v852
        %v1078 = vunpack.c.h.b16 %v852
        %v1079 = vunpack.c.l.b16 %v853
        %v1080 = vunpack.c.h.b16 %v853
        %v1081 = vunpack.c.l.b16 %v854
        %v1082 = vunpack.c.h.b16 %v854
        %v1083 = vunpack.c.l.b16 %v855
        %v1084 = vunpack.c.h.b16 %v855
        %v1085 = vunpack.c.l.b16 %v856
        %v1086 = vunpack.c.h.b16 %v856
        %v1087 = vunpack.c.l.b16 %v857
        %v1088 = vunpack.c.h.b16 %v857
        %v1089 = vunpack.c.l.b16 %v858
        %v1090 = vunpack.c.h.b16 %v858
        %v1091 = vunpack.c.l.b16 %v859
        %v1092 = vunpack.c.h.b16 %v859
        %v1093 = vunpack.c.l.b16 %v860
        %v1094 = vunpack.c.h.b16 %v860
        %v1095 = vunpack.c.l.b16 %v861
        %v1096 = vunpack.c.h.b16 %v861
        %v1097 = vunpack.c.l.b16 %v862
        %v1098 = vunpack.c.h.b16 %v862
        %v1099 = vunpack.c.l.b16 %v863
        %v1100 = vunpack.c.h.b16 %v863
        %v1101 = vunpack.c.l.b16 %v864
        %v1102 = vunpack.c.h.b16 %v864
        %v1103 = vunpack.c.l.b16 %v865
        %v1104 = vunpack.c.h.b16 %v865
        %v1105 = vunpack.c.l.b16 %v866
        %v1106 = vunpack.c.h.b16 %v866
        %v1107 = vunpack.c.l.b16 %v867
        %v1108 = vunpack.c.h.b16 %v867
        %v1109 = vunpack.c.l.b16 %v868
        %v1110 = vunpack.c.h.b16 %v868
        %v1111 = vunpack.c.l.b16 %v869
        %v1112 = vunpack.c.h.b16 %v869
        %v1113 = vunpack.c.l.b16 %v870
        %v1114 = vunpack.c.h.b16 %v870
        %v1115 = vunpack.c.l.b16 %v871
        %v1116 = vunpack.c.h.b16 %v871
        %v1117 = vunpack.c.l.b16 %v872
        %v1118 = vunpack.c.h.b16 %v872
        %v1119 = vunpack.c.l.b16 %v873
        %v1120 = vunpack.c.h.b16 %v873
        %v1121 = vunpack.c.l.b16 %v874
        %v1122 = vunpack.c.h.b16 %v874
        %v1123 = vunpack.c.l.b16 %v875
        %v1124 = vunpack.c.h.b16 %v875
        %v1125 = vunpack.c.l.b16 %v876
        %v1126 = vunpack.c.h.b16 %v876
        %v1127 = vunpack.c.l.b16 %v877
        %v1128 = vunpack.c.h.b16 %v877
        %v1129 = vunpack.c.l.b16 %v878
        %v1130 = vunpack.c.h.b16 %v878
        %v1131 = vunpack.c.l.b16 %v879
        %v1132 = vunpack.c.h.b16 %v879
        %v1133 = vunpack.c.l.b16 %v880
        %v1134 = vunpack.c.h.b16 %v880
        %v1135 = vunpack.c.l.b16 %v881
        %v1136 = vunpack.c.h.b16 %v881
        %v1137 = vunpack.c.l.b16 %v882
        %v1138 = vunpack.c.h.b16 %v882
        %v1139 = vunpack.c.l.b16 %v883
        %v1140 = vunpack.c.h.b16 %v883
        %v1141 = vunpack.c.l.b16 %v884
        %v1142 = vunpack.c.h.b16 %v884
        %v1143 = vunpack.c.l.b16 %v885
        %v1144 = vunpack.c.h.b16 %v885
        %v1145 = vunpack.c.l.b16 %v886
        %v1146 = vunpack.c.h.b16 %v886
        %v1147 = vunpack.c.l.b16 %v887
        %v1148 = vunpack.c.h.b16 %v887
        %v1149 = vunpack.c.l.b16 %v888
        %v1150 = vunpack.c.h.b16 %v888
        %v1151 = vunpack.c.l.b16 %v889
        %v1152 = vunpack.c.h.b16 %v889
        %v1153 = vunpack.c.l.b16 %v890
        %v1154 = vunpack.c.h.b16 %v890
        %v1155 = vunpack.c.l.b16 %v891
        %v1156 = vunpack.c.h.b16 %v891
        %v1157 = vunpack.c.l.b16 %v892
        %v1158 = vunpack.c.h.b16 %v892
        %v1159 = vunpack.c.l.b16 %v893
        %v1160 = vunpack.c.h.b16 %v893
        %v1161 = vunpack.c.l.b16 %v894
        %v1162 = vunpack.c.h.b16 %v894
        %v1163 = vunpack.c.l.b16 %v895
        %v1164 = vunpack.c.h.b16 %v895
        %v1165 = vunpack.c.l.b16 %v896
        %v1166 = vunpack.c.h.b16 %v896
        %v1167 = vunpack.c.l.b16 %v897
        %v1168 = vunpack.c.h.b16 %v897
        %v1169 = vunpack.c.l.b16 %v898
        %v1170 = vunpack.c.h.b16 %v898
        %v1171 = vunpack.c.l.b16 %v899
        %v1172 = vunpack.c.h.b16 %v899
        %v1173 = vunpack.c.l.b16 %v900
        %v1174 = vunpack.c.h.b16 %v900
        %v1175 = vunpack.c.l.b16 %v901
        %v1176 = vunpack.c.h.b16 %v901
        %v1177 = vunpack.c.l.b16 %v902
        %v1178 = vunpack.c.h.b16 %v902
        %v1179 = vunpack.c.l.b16 %v903
        %v1180 = vunpack.c.h.b16 %v903
        %v1181 = vunpack.c.l.b16 %v904
        %v1182 = vunpack.c.h.b16 %v904
        %v1183 = vunpack.c.l.b16 %v905
        %v1184 = vunpack.c.h.b16 %v905
        %v1185 = vunpack.c.l.b16 %v906
        %v1186 = vunpack.c.h.b16 %v906
        %v1187 = vunpack.c.l.b16 %v907
        %v1188 = vunpack.c.h.b16 %v907
        %v1189 = vunpack.c.l.b16 %v908
        %v1190 = vunpack.c.h.b16 %v908
        %v1191 = vunpack.c.l.b16 %v909
        %v1192 = vunpack.c.h.b16 %v909
        %v1193 = vunpack.c.l.b16 %v910
        %v1194 = vunpack.c.h.b16 %v910
        %v1195 = vunpack.c.l.b16 %v911
        %v1196 = vunpack.c.h.b16 %v911
        %v1197 = vunpack.c.l.b16 %v912
        %v1198 = vunpack.c.h.b16 %v912
        %v1199 = vunpack.c.l.b16 %v913
        %v1200 = vunpack.c.h.b16 %v913
        %v1201 = vunpack.c.l.b16 %v914
        %v1202 = vunpack.c.h.b16 %v914
        %v1203 = vunpack.c.l.b16 %v915
        %v1204 = vunpack.c.h.b16 %v915
        %v1205 = vunpack.c.l.b16 %v916
        %v1206 = vunpack.c.h.b16 %v916
        %v1207 = vunpack.c.l.b16 %v917
        %v1208 = vunpack.c.h.b16 %v917
        %v1209 = vunpack.c.l.b16 %v918
        %v1210 = vunpack.c.h.b16 %v918
        %v1211 = vunpack.c.l.b16 %v919
        %v1212 = vunpack.c.h.b16 %v919
        %v1213 = vunpack.c.l.b16 %v920
        %v1214 = vunpack.c.h.b16 %v920
        %v1215 = vunpack.c.l.b16 %v921
        %v1216 = vunpack.c.h.b16 %v921
        %v1217 = vunpack.c.l.b16 %v922
        %v1218 = vunpack.c.h.b16 %v922
        %v1219 = vunpack.c.l.b16 %v923
        %v1220 = vunpack.c.h.b16 %v923
        %v1221 = vunpack.c.l.b16 %v924
        %v1222 = vunpack.c.h.b16 %v924
        %v1223 = vunpack.c.l.b16 %v925
        %v1224 = vunpack.c.h.b16 %v925
        %v1225 = vunpack.c.l.b16 %v926
        %v1226 = vunpack.c.h.b16 %v926
        %v1227 = vpack.c.b16 %v1037, %v1035
        %v1228 = vpack.c.b16 %v1038, %v1036
        %v1229 = vpack.c.b16 %v1041, %v1039
        %v1230 = vpack.c.b16 %v1042, %v1040
        %v1231 = vpack.c.b16 %v1045, %v1043
        %v1232 = vpack.c.b16 %v1046, %v1044
        %v1233 = vpack.c.b16 %v1049, %v1047
        %v1234 = vpack.c.b16 %v1050, %v1048
        %v1235 = vpack.c.b16 %v1053, %v1051
        %v1236 = vpack.c.b16 %v1054, %v1052
        %v1237 = vpack.c.b16 %v1057, %v1055
        %v1238 = vpack.c.b16 %v1058, %v1056
        %v1239 = vpack.c.b16 %v1061, %v1059
        %v1240 = vpack.c.b16 %v1062, %v1060
        %v1241 = vpack.c.b16 %v1065, %v1063
        %v1242 = vpack.c.b16 %v1066, %v1064
        %v1243 = vpack.c.b16 %v1069, %v1067
        %v1244 = vpack.c.b16 %v1070, %v1068
        %v1245 = vpack.c.b16 %v1073, %v1071
        %v1246 = vpack.c.b16 %v1074, %v1072
        %v1247 = vpack.c.b16 %v1077, %v1075
        %v1248 = vpack.c.b16 %v1078, %v1076
        %v1249 = vpack.c.b16 %v1081, %v1079
        %v1250 = vpack.c.b16 %v1082, %v1080
        %v1251 = vpack.c.b16 %v1085, %v1083
        %v1252 = vpack.c.b16 %v1086, %v1084
        %v1253 = vpack.c.b16 %v1089, %v1087
        %v1254 = vpack.c.b16 %v1090, %v1088
        %v1255 = vpack.c.b16 %v1093, %v1091
        %v1256 = vpack.c.b16 %v1094, %v1092
        %v1257 = vpack.c.b16 %v1097, %v1095
        %v1258 = vpack.c.b16 %v1098, %v1096
        %v1259 = vpack.c.b16 %v1101, %v1099
        %v1260 = vpack.c.b16 %v1102, %v1100
        %v1261 = vpack.c.b16 %v1105, %v1103
        %v1262 = vpack.c.b16 %v1106, %v1104
        %v1263 = vpack.c.b16 %v1109, %v1107
        %v1264 = vpack.c.b16 %v1110, %v1108
        %v1265 = vpack.c.b16 %v1113, %v1111
        %v1266 = vpack.c.b16 %v1114, %v1112
        %v1267 = vpack.c.b16 %v1117, %v1115
        %v1268 = vpack.c.b16 %v1118, %v1116
        %v1269 = vpack.c.b16 %v1121, %v1119
        %v1270 = vpack.c.b16 %v1122, %v1120
        %v1271 = vpack.c.b16 %v1125, %v1123
        %v1272 = vpack.c.b16 %v1126, %v1124
        %v1273 = vpack.c.b16 %v1129, %v1127
        %v1274 = vpack.c.b16 %v1130, %v1128
        %v1275 = vpack.c.b16 %v1133, %v1131
        %v1276 = vpack.c.b16 %v1134, %v1132
        %v1277 = vpack.c.b16 %v1137, %v1135
        %v1278 = vpack.c.b16 %v1138, %v1136
        %v1279 = vpack.c.b16 %v1141, %v1139
        %v1280 = vpack.c.b16 %v1142, %v1140
        %v1281 = vpack.c.b16 %v1145, %v1143
        %v1282 = vpack.c.b16 %v1146, %v1144
        %v1283 = vpack.c.b16 %v1149, %v1147
        %v1284 = vpack.c.b16 %v1150, %v1148
        %v1285 = vpack.c.b16 %v1153, %v1151
        %v1286 = vpack.c.b16 %v1154, %v1152
        %v1287 = vpack.c.b16 %v1157, %v1155
        %v1288 = vpack.c.b16 %v1158, %v1156
        %v1289 = vpack.c.b16 %v1161, %v1159
        %v1290 = vpack.c.b16 %v1162, %v1160
        %v1291 = vpack.c.b16 %v1165, %v1163
        %v1292 = vpack.c.b16 %v1166, %v1164
        %v1293 = vpack.c.b16 %v1169, %v1167
        %v1294 = vpack.c.b16 %v1170, %v1168
        %v1295 = vpack.c.b16 %v1173, %v1171
        %v1296 = vpack.c.b16 %v1174, %v1172
        %v1297 = vpack.c.b16 %v1177, %v1175
        %v1298 = vpack.c.b16 %v1178, %v1176
        %v1299 = vpack.c.b16 %v1181, %v1179
        %v1300 = vpack.c.b16 %v1182, %v1180
        %v1301 = vpack.c.b16 %v1185, %v1183
        %v1302 = vpack.c.b16 %v1186, %v1184
        %v1303 = vpack.c.b16 %v1189, %v1187
        %v1304 = vpack.c.b16 %v1190, %v1188
        %v1305 = vpack.c.b16 %v1193, %v1191
        %v1306 = vpack.c.b16 %v1194, %v1192
        %v1307 = vpack.c.b16 %v1197, %v1195
        %v1308 = vpack.c.b16 %v1198, %v1196
        %v1309 = vpack.c.b16 %v1201, %v1199
        %v1310 = vpack.c.b16 %v1202, %v1200
        %v1311 = vpack.c.b16 %v1205, %v1203
        %v1312 = vpack.c.b16 %v1206, %v1204
        %v1313 = vpack.c.b16 %v1209, %v1207
        %v1314 = vpack.c.b16 %v1210, %v1208
        %v1315 = vpack.c.b16 %v1213, %v1211
        %v1316 = vpack.c.b16 %v1214, %v1212
        %v1317 = vpack.c.b16 %v1217, %v1215
        %v1318 = vpack.c.b16 %v1218, %v1216
        %v1319 = vpack.c.b16 %v1221, %v1219
        %v1320 = vpack.c.b16 %v1222, %v1220
        %v1321 = vpack.c.b16 %v1225, %v1223
        %v1322 = vpack.c.b16 %v1226, %v1224
        %1419 = vmatprep.subr.bf16.mxu0 %v1228
        %1420 = vmatpush1.bf16.msra.mxu0 %v1227
        %1421 = vmatprep.subr.bf16.mxu0 %v1230
        %1422 = vmatpush1.bf16.msra.mxu0 %v1229
        %1423 = vmatprep.subr.bf16.mxu0 %v1232
        %1424 = vmatpush1.bf16.msra.mxu0 %v1231
        %1425 = vmatprep.subr.bf16.mxu0 %v1234
        %1426 = vmatpush1.bf16.msra.mxu0 %v1233
        %1427 = vmatprep.subr.bf16.mxu0 %v1236
        %1428 = vmatpush1.bf16.msra.mxu0 %v1235
        %1429 = vmatprep.subr.bf16.mxu0 %v1238
        %1430 = vmatpush1.bf16.msra.mxu0 %v1237
        %1431 = vmatprep.subr.bf16.mxu0 %v1240
        %1432 = vmatpush1.bf16.msra.mxu0 %v1239
        %1433 = vmatprep.subr.bf16.mxu0 %v1242
        %1434 = vmatpush1.bf16.msra.mxu0 %v1241
        %1435 = vmatprep.subr.bf16.mxu0 %v1244
        %1436 = vmatpush1.bf16.msra.mxu0 %v1243
        %1437 = vmatprep.subr.bf16.mxu0 %v1246
        %1438 = vmatpush1.bf16.msra.mxu0 %v1245
        %1439 = vmatprep.subr.bf16.mxu0 %v1248
        %1440 = vmatpush1.bf16.msra.mxu0 %v1247
        %1441 = vmatprep.subr.bf16.mxu0 %v1250
        %1442 = vmatpush1.bf16.msra.mxu0 %v1249
        %1443 = vmatprep.subr.bf16.mxu0 %v1252
        %1444 = vmatpush1.bf16.msra.mxu0 %v1251
        %1445 = vmatprep.subr.bf16.mxu0 %v1254
        %1446 = vmatpush1.bf16.msra.mxu0 %v1253
        %1447 = vmatprep.subr.bf16.mxu0 %v1256
        %1448 = vmatpush1.bf16.msra.mxu0 %v1255
        %1449 = vmatprep.subr.bf16.mxu0 %v1258
        %1450 = vmatpush1.bf16.msra.mxu0 %v1257
        %1451 = vmatprep.mubr.bf16.mxu0 %v826
        %1452 = vmatmul.mubr.bf16.gmra.mrb[0].mxu0 %v825
        %v1453 = vpop.f32.mrb[0].mxu0
        %v1454 = vadd.f32 %v932, %v1453
        %v1455 = vpop.f32.mrb[0].mxu0
        %v1456 = vadd.f32 %v936, %v1455
        %v1457 = vpop.f32.mrb[0].mxu0
        %v1458 = vpop.f32.mrb[0].mxu0
        %1459 = vdwg.mxu0
        %1460 = vmatprep.subr.bf16.mxu0 %v1260
        %1461 = vmatpush1.bf16.msra.mxu0 %v1259
        %1462 = vmatprep.subr.bf16.mxu0 %v1262
        %1463 = vmatpush1.bf16.msra.mxu0 %v1261
        %1464 = vmatprep.subr.bf16.mxu0 %v1264
        %1465 = vmatpush1.bf16.msra.mxu0 %v1263
        %1466 = vmatprep.subr.bf16.mxu0 %v1266
        %1467 = vmatpush1.bf16.msra.mxu0 %v1265
        %1468 = vmatprep.subr.bf16.mxu0 %v1268
        %1469 = vmatpush1.bf16.msra.mxu0 %v1267
        %1470 = vmatprep.subr.bf16.mxu0 %v1270
        %1471 = vmatpush1.bf16.msra.mxu0 %v1269
        %1472 = vmatprep.subr.bf16.mxu0 %v1272
        %1473 = vmatpush1.bf16.msra.mxu0 %v1271
        %1474 = vmatprep.subr.bf16.mxu0 %v1274
        %1475 = vmatpush1.bf16.msra.mxu0 %v1273
        %1476 = vmatprep.subr.bf16.mxu0 %v1276
        %1477 = vmatpush1.bf16.msra.mxu0 %v1275
        %1478 = vmatprep.subr.bf16.mxu0 %v1278
        %1479 = vmatpush1.bf16.msra.mxu0 %v1277
        %1480 = vmatprep.subr.bf16.mxu0 %v1280
        %1481 = vmatpush1.bf16.msra.mxu0 %v1279
        %1482 = vmatprep.subr.bf16.mxu0 %v1282
        %1483 = vmatpush1.bf16.msra.mxu0 %v1281
        %1484 = vmatprep.subr.bf16.mxu0 %v1284
        %1485 = vmatpush1.bf16.msra.mxu0 %v1283
        %1486 = vmatprep.subr.bf16.mxu0 %v1286
        %1487 = vmatpush1.bf16.msra.mxu0 %v1285
        %1488 = vmatprep.subr.bf16.mxu0 %v1288
        %1489 = vmatpush1.bf16.msra.mxu0 %v1287
        %1490 = vmatprep.subr.bf16.mxu0 %v1290
        %1491 = vmatpush1.bf16.msra.mxu0 %v1289
        %1492 = vmatprep.mubr.bf16.mxu0 %v828
        %1493 = vmatmul.mubr.bf16.gmra.mrb[0].mxu0 %v827
        %v1494 = vpop.f32.mrb[0].mxu0
        %v1495 = vadd.f32 %v1454, %v1494
        %v1496 = vpop.f32.mrb[0].mxu0
        %v1497 = vadd.f32 %v1456, %v1496
        %v1498 = vpop.f32.mrb[0].mxu0
        %v1499 = vpop.f32.mrb[0].mxu0
        %1500 = vdwg.mxu0
        %1501 = vmatprep.subr.bf16.mxu0 %v1292
        %1502 = vmatpush1.bf16.msra.mxu0 %v1291
        %1503 = vmatprep.subr.bf16.mxu0 %v1294
        %1504 = vmatpush1.bf16.msra.mxu0 %v1293
        %1505 = vmatprep.subr.bf16.mxu0 %v1296
        %1506 = vmatpush1.bf16.msra.mxu0 %v1295
        %1507 = vmatprep.subr.bf16.mxu0 %v1298
        %1508 = vmatpush1.bf16.msra.mxu0 %v1297
        %1509 = vmatprep.subr.bf16.mxu0 %v1300
        %1510 = vmatpush1.bf16.msra.mxu0 %v1299
        %1511 = vmatprep.subr.bf16.mxu0 %v1302
        %1512 = vmatpush1.bf16.msra.mxu0 %v1301
        %1513 = vmatprep.subr.bf16.mxu0 %v1304
        %1514 = vmatpush1.bf16.msra.mxu0 %v1303
        %1515 = vmatprep.subr.bf16.mxu0 %v1306
        %1516 = vmatpush1.bf16.msra.mxu0 %v1305
        %1517 = vmatprep.subr.bf16.mxu0 %v1308
        %1518 = vmatpush1.bf16.msra.mxu0 %v1307
        %1519 = vmatprep.subr.bf16.mxu0 %v1310
        %1520 = vmatpush1.bf16.msra.mxu0 %v1309
        %1521 = vmatprep.subr.bf16.mxu0 %v1312
        %1522 = vmatpush1.bf16.msra.mxu0 %v1311
        %1523 = vmatprep.subr.bf16.mxu0 %v1314
        %1524 = vmatpush1.bf16.msra.mxu0 %v1313
        %1525 = vmatprep.subr.bf16.mxu0 %v1316
        %1526 = vmatpush1.bf16.msra.mxu0 %v1315
        %1527 = vmatprep.subr.bf16.mxu0 %v1318
        %1528 = vmatpush1.bf16.msra.mxu0 %v1317
        %1529 = vmatprep.subr.bf16.mxu0 %v1320
        %1530 = vmatpush1.bf16.msra.mxu0 %v1319
        %1531 = vmatprep.subr.bf16.mxu0 %v1322
        %1532 = vmatpush1.bf16.msra.mxu0 %v1321
        %1533 = vmatprep.mubr.bf16.mxu0 %v830
        %1534 = vmatmul.mubr.bf16.gmra.mrb[0].mxu0 %v829
        %v1535 = vpop.f32.mrb[0].mxu0
        %v1536 = vadd.f32 %v1495, %v1535
        %v1537 = vpop.f32.mrb[0].mxu0
        %v1538 = vadd.f32 %v1497, %v1537
        %v1539 = vpop.f32.mrb[0].mxu0
        %v1540 = vpop.f32.mrb[0].mxu0
        %1541 = vdwg.mxu0
        %1542 = vst [vmem:[%s217] sm:$0xff] %v1536
        %1543 = vst.msk [vmem:[%s217 + $0x8] sm:$0xff] %vm692, %v1538
        %s1544 = sand.u32 %s137, 1
        %s1545 = scalar_lea.sflag [#allocation3], %s1544
        %s1546 = sand.u32 %s137, 1
        %s1547 = smul.addr %s1546, 16
        %s1548 = scalar_lea.vmem [#allocation2], %s1547
        // Predicated region
        $region41: #{tpu_custom_call.1} parent=39 // pred_check
          %p1549 = pneg %p147
        $region42: #{tpu_custom_call.1} parent=39 // pred_check_branch
          %1551 = sbr.rel (%p1549) target = $region44
        $region43: #{tpu_custom_call.1} parent=39 // pred_region
          %s1553 = ssub.s32 256, 256
          %1554 = vsyncadd %s1545, %s1553
          %s1555 = smul.addr %s19, 2
          %s1556 = smul.addr %s1555, 128
          %s1557 = scalar_lea.hbm %s5, %s1556
          %s1559 = sshll.u32 %s1548, 4
          %s1560 = int_to_ptr.vmem [resolvable:$true] %s1559
          %1562 = dma.vmem_to_hbm [thread:$0]  %s1560, 256, %s1557, %s1545
        $region44: #{tpu_custom_call.1} parent=39 // pred_fallthru
          _
      $region40: #{tpu_custom_call.1} parent=5 // pred_fallthru
        _
      %p1563 = scmp.le.s32.totalorder 2, %s14
      // Predicated region
      $region45: #{tpu_custom_call.1} parent=5 // pred_check
        %p1564 = pneg %p1563
      $region46: #{tpu_custom_call.1} parent=5 // pred_check_branch
        %1566 = sbr.rel (%p1564) target = $region48
      $region47: #{tpu_custom_call.1} parent=5 // pred_region
        %s1567 = ssub.s32 %s14, 2
        // Predicated region
        $region49: #{tpu_custom_call.1} parent=47 // pred_check
          %p1568 = pneg %p153
        $region50: #{tpu_custom_call.1} parent=47 // pred_check_branch
          %1570 = sbr.rel (%p1568) target = $region52
        $region51: #{tpu_custom_call.1} parent=47 // pred_region
          %s1571 = sand.u32 %s138, 1
          %s1572 = scalar_lea.sflag [#allocation3], %s1571
          %s1573 = sand.u32 %s138, 1
          %s1574 = smul.addr %s1573, 16
          %s1575 = scalar_lea.vmem [#allocation2], %s1574
          %1576 = dma.done %s1572, 256
        $region52: #{tpu_custom_call.1} parent=47 // pred_fallthru
          _
      $region48: #{tpu_custom_call.1} parent=5 // pred_fallthru
        _
    $region6: #{tpu_custom_call.1} parent=1 // loop_footer
      %s18 = sadd.s32 1, %s14
    $region7: #{tpu_custom_call.1} parent=1 // loop_footer_branch
      %13 = sbr.rel target = $region3
    $region8: #{tpu_custom_call.1} parent=1 // loop_exit
      _
    %1577 = vsyncpa [#allocation3], 1
    %s1578 = scalar_lea.sflag [#allocation3], 1
    %1579 = vsyncpa %s1578, 1

// kernel: tpu_custom_call.1
$region0: #{tpu_custom_call.1}
  #allocation0 [shape = 'u32[]', space=smem, size = 0x4, offset = 0x4, fixed_abs, tag = 'smem constant byte address 0x4 - core index']
  #allocation1 [shape = 'u32[144,128]{1,0:T(1,128)}', space=vmem, size = 0x12000, scoped, tag = 'internal scratch']
  %s0 = inlined_call_operand.vmem [shape: f32[16,192], index: 0, kind: input, shape index: {}]
  %s1 = inlined_call_operand.vmem [shape: bf16[192,768], index: 1, kind: input, shape index: {}]
  %s2 = inlined_call_operand.vmem [shape: f32[1,768], index: 2, kind: input, shape index: {}]
  %s3 = inlined_call_operand.vmem [shape: bf16[768,192], index: 3, kind: input, shape index: {}]
  %s4 = inlined_call_operand.vmem [shape: f32[1,192], index: 4, kind: input, shape index: {}]
  %s5 = inlined_call_operand.hbm [shape: f32[16,192], index: 5, kind: output, shape index: {}]
  %s6 = sld [smem:[#allocation0]]
  $region53: #{tpu_custom_call.1} parent=0
    _
  %s8 = ssub.s32 1, %s6
  %s9 = scalar_select 0, %s8, %s6
  $region1: #{tpu_custom_call.1} parent=0
    #allocation2 [shape = 'u8[16384]{0}', space=vmem, size = 0x4000, scoped, tag = 'output window, operand 0']
    #allocation3 [shape = 's32[2]{0}', space=sflag, size = 0x8, scoped, tag = 'scoped memory for tpu_custom_call.1']
    %10 = vsyncpa [#allocation3], 0
    %s11 = scalar_lea.sflag [#allocation3], 1
    %12 = vsyncpa %s11, 0
    loop: start=0, step=1, limit=4
    $region2: #{tpu_custom_call.1} parent=1 // loop_pre_header
      _
    $region3: #{tpu_custom_call.1} parent=1 // loop_header
      %s14 = sphi 0, %s18
      %p15 = scmp.ge.s32.totalorder %s14, 4
      %s24 = sphi 0, %s26
      %s27 = sphi 0, %s24
      %s28 = sphi 0, %s27
      %s44 = sphi 0, %s28
      %s48 = sphi 0, %s48
      %s50 = sphi 0, %s48
      %s51 = sphi 0, %s50
      %s65 = sphi 0, %s51
      %s69 = sphi 0, %s69
      %s71 = sphi 0, %s69
      %s72 = sphi 0, %s71
      %s86 = sphi 0, %s72
      %s90 = sphi 0, %s90
      %s92 = sphi 0, %s90
      %s93 = sphi 0, %s92
      %s107 = sphi 0, %s93
      %s111 = sphi 0, %s111
      %s113 = sphi 0, %s111
      %s114 = sphi 0, %s113
      %s128 = sphi 0, %s114
      %s134 = sphi 0, %s136
      %s137 = sphi 0, %s134
      %s138 = sphi 0, %s137
      %s154 = sphi 0, %s138
    $region4: #{tpu_custom_call.1} parent=1 // loop_header_branch
      %17 = sbr.rel (%p15) target = $region8
    $region5: #{tpu_custom_call.1} parent=1 // loop_body
      %s19 = ssub.s32 %s14, 1
      %s20 = ssub.s32 %s14, 2
      %s21 = sadd.s32 %s14, 1
      %s22 = ssub.s32 %s14, %s21
      %p23 = scmp.eq.s32.totalorder %s22, 0
      %s25 = sadd.s32 %s24, 1
      %s26 = scalar_select %p23, %s24, %s25
      %p29 = pneg %p23
      %p30 = scmp.eq.s32.totalorder %s14, 1
      %p31 = por %p29, %p30
      %p32 = scmp.ne.s32.totalorder %s24, %s27
      %p33 = scmp.eq.s32.totalorder %s14, 0
      %p34 = por %p32, %p33
      %p35 = scmp.ne.s32.totalorder %s24, %s27
      %p36 = scmp.eq.s32.totalorder %s19, 1
      %p37 = por %p35, %p36
      %p38 = scmp.ne.s32.totalorder %s27, %s28
      %p39 = scmp.eq.s32.totalorder %s19, 0
      %p40 = por %p38, %p39
      %p41 = scmp.ne.s32.totalorder %s27, %s28
      %p42 = scmp.eq.s32.totalorder %s20, 1
      %p43 = por %p41, %p42
      %p45 = scmp.ne.s32.totalorder %s28, %s44
      %p46 = scmp.eq.s32.totalorder %s20, 0
      %p47 = por %p45, %p46
      %s49 = sadd.s32 %s48, 1
      %p52 = scmp.eq.s32.totalorder %s14, 1
      %p53 = scmp.ne.s32.totalorder %s48, %s50
      %p54 = scmp.eq.s32.totalorder %s14, 0
      %p55 = por %p53, %p54
      %p56 = scmp.ne.s32.totalorder %s48, %s50
      %p57 = scmp.eq.s32.totalorder %s19, 1
      %p58 = por %p56, %p57
      %p59 = scmp.ne.s32.totalorder %s50, %s51
      %p60 = scmp.eq.s32.totalorder %s19, 0
      %p61 = por %p59, %p60
      %p62 = scmp.ne.s32.totalorder %s50, %s51
      %p63 = scmp.eq.s32.totalorder %s20, 1
      %p64 = por %p62, %p63
      %p66 = scmp.ne.s32.totalorder %s51, %s65
      %p67 = scmp.eq.s32.totalorder %s20, 0
      %p68 = por %p66, %p67
      %s70 = sadd.s32 %s69, 1
      %p73 = scmp.eq.s32.totalorder %s14, 1
      %p74 = scmp.ne.s32.totalorder %s69, %s71
      %p75 = scmp.eq.s32.totalorder %s14, 0
      %p76 = por %p74, %p75
      %p77 = scmp.ne.s32.totalorder %s69, %s71
      %p78 = scmp.eq.s32.totalorder %s19, 1
      %p79 = por %p77, %p78
      %p80 = scmp.ne.s32.totalorder %s71, %s72
      %p81 = scmp.eq.s32.totalorder %s19, 0
      %p82 = por %p80, %p81
      %p83 = scmp.ne.s32.totalorder %s71, %s72
      %p84 = scmp.eq.s32.totalorder %s20, 1
      %p85 = por %p83, %p84
      %p87 = scmp.ne.s32.totalorder %s72, %s86
      %p88 = scmp.eq.s32.totalorder %s20, 0
      %p89 = por %p87, %p88
      %s91 = sadd.s32 %s90, 1
      %p94 = scmp.eq.s32.totalorder %s14, 1
      %p95 = scmp.ne.s32.totalorder %s90, %s92
      %p96 = scmp.eq.s32.totalorder %s14, 0
      %p97 = por %p95, %p96
      %p98 = scmp.ne.s32.totalorder %s90, %s92
      %p99 = scmp.eq.s32.totalorder %s19, 1
      %p100 = por %p98, %p99
      %p101 = scmp.ne.s32.totalorder %s92, %s93
      %p102 = scmp.eq.s32.totalorder %s19, 0
      %p103 = por %p101, %p102
      %p104 = scmp.ne.s32.totalorder %s92, %s93
      %p105 = scmp.eq.s32.totalorder %s20, 1
      %p106 = por %p104, %p105
      %p108 = scmp.ne.s32.totalorder %s93, %s107
      %p109 = scmp.eq.s32.totalorder %s20, 0
      %p110 = por %p108, %p109
      %s112 = sadd.s32 %s111, 1
      %p115 = scmp.eq.s32.totalorder %s14, 1
      %p116 = scmp.ne.s32.totalorder %s111, %s113
      %p117 = scmp.eq.s32.totalorder %s14, 0
      %p118 = por %p116, %p117
      %p119 = scmp.ne.s32.totalorder %s111, %s113
      %p120 = scmp.eq.s32.totalorder %s19, 1
      %p121 = por %p119, %p120
      %p122 = scmp.ne.s32.totalorder %s113, %s114
      %p123 = scmp.eq.s32.totalorder %s19, 0
      %p124 = por %p122, %p123
      %p125 = scmp.ne.s32.totalorder %s113, %s114
      %p126 = scmp.eq.s32.totalorder %s20, 1
      %p127 = por %p125, %p126
      %p129 = scmp.ne.s32.totalorder %s114, %s128
      %p130 = scmp.eq.s32.totalorder %s20, 0
      %p131 = por %p129, %p130
      %s132 = ssub.s32 %s14, %s21
      %p133 = scmp.eq.s32.totalorder %s132, 0
      %s135 = sadd.s32 %s134, 1
      %s136 = scalar_select %p133, %s134, %s135
      %p139 = pneg %p133
      %p140 = scmp.eq.s32.totalorder %s14, 1
      %p141 = por %p139, %p140
      %p142 = scmp.ne.s32.totalorder %s134, %s137
      %p143 = scmp.eq.s32.totalorder %s14, 0
      %p144 = por %p142, %p143
      %p145 = scmp.ne.s32.totalorder %s134, %s137
      %p146 = scmp.eq.s32.totalorder %s19, 1
      %p147 = por %p145, %p146
      %p148 = scmp.ne.s32.totalorder %s137, %s138
      %p149 = scmp.eq.s32.totalorder %s19, 0
      %p150 = por %p148, %p149
      %p151 = scmp.ne.s32.totalorder %s137, %s138
      %p152 = scmp.eq.s32.totalorder %s20, 1
      %p153 = por %p151, %p152
      %p155 = scmp.ne.s32.totalorder %s138, %s154
      %p156 = scmp.eq.s32.totalorder %s20, 0
      %p157 = por %p155, %p156
      %p158 = scmp.le.s32.totalorder 1, %s14
      %p159 = scmp.lt.s32.totalorder %s14, 3
      %p160 = pnand %p158, %p159
      %p161 = pneg %p160
      // Predicated region
      $region9: #{tpu_custom_call.1} parent=5 // pred_check
        _
      $region10: #{tpu_custom_call.1} parent=5 // pred_check_branch
        %163 = sbr.rel (%p160) target = $region12
      $region11: #{tpu_custom_call.1} parent=5 // pred_region
        %s164 = ssub.s32 %s14, 1
        // Predicated region
        $region13: #{tpu_custom_call.1} parent=11 // pred_check
          %p165 = pneg %p61
        $region14: #{tpu_custom_call.1} parent=11 // pred_check_branch
          %167 = sbr.rel (%p165) target = $region16
        $region15: #{tpu_custom_call.1} parent=11 // pred_region
          _
        $region16: #{tpu_custom_call.1} parent=11 // pred_fallthru
          _
        // Predicated region
        $region17: #{tpu_custom_call.1} parent=11 // pred_check
          %p168 = pneg %p82
        $region18: #{tpu_custom_call.1} parent=11 // pred_check_branch
          %170 = sbr.rel (%p168) target = $region20
        $region19: #{tpu_custom_call.1} parent=11 // pred_region
          _
        $region20: #{tpu_custom_call.1} parent=11 // pred_fallthru
          _
        // Predicated region
        $region21: #{tpu_custom_call.1} parent=11 // pred_check
          %p171 = pneg %p103
        $region22: #{tpu_custom_call.1} parent=11 // pred_check_branch
          %173 = sbr.rel (%p171) target = $region24
        $region23: #{tpu_custom_call.1} parent=11 // pred_region
          _
        $region24: #{tpu_custom_call.1} parent=11 // pred_fallthru
          _
        // Predicated region
        $region25: #{tpu_custom_call.1} parent=11 // pred_check
          %p174 = pneg %p124
        $region26: #{tpu_custom_call.1} parent=11 // pred_check_branch
          %176 = sbr.rel (%p174) target = $region28
        $region27: #{tpu_custom_call.1} parent=11 // pred_region
          _
        $region28: #{tpu_custom_call.1} parent=11 // pred_fallthru
          _
      $region12: #{tpu_custom_call.1} parent=5 // pred_fallthru
        _
      %p177 = scmp.lt.s32.totalorder %s14, 2
      // Predicated region
      $region29: #{tpu_custom_call.1} parent=5 // pred_check
        %p178 = pneg %p177
      $region30: #{tpu_custom_call.1} parent=5 // pred_check_branch
        %180 = sbr.rel (%p178) target = $region32
      $region31: #{tpu_custom_call.1} parent=5 // pred_region
        // Predicated region
        $region33: #{tpu_custom_call.1} parent=31 // pred_check
          %p181 = pneg %p34
        $region34: #{tpu_custom_call.1} parent=31 // pred_check_branch
          %183 = sbr.rel (%p181) target = $region36
        $region35: #{tpu_custom_call.1} parent=31 // pred_region
          %p184 = scmp.lt.s32.totalorder %s14, 1
          %s185 = scalar_select %p184, %s14, 1
          %s186 = smul.addr %s185, 2
          %s187 = smul.addr %s186, 8
          %s188 = scalar_lea.vmem %s0, %s187
        $region36: #{tpu_custom_call.1} parent=31 // pred_fallthru
          _
      $region32: #{tpu_custom_call.1} parent=5 // pred_fallthru
        _
      %p189 = scmp.le.s32.totalorder 1, %s14
      %p190 = scmp.lt.s32.totalorder %s14, 3
      %p191 = pnand %p189, %p190
      %p192 = pneg %p191
      // Predicated region
      $region37: #{tpu_custom_call.1} parent=5 // pred_check
        _
      $region38: #{tpu_custom_call.1} parent=5 // pred_check_branch
        %194 = sbr.rel (%p191) target = $region40
      $region39: #{tpu_custom_call.1} parent=5 // pred_region
        %s195 = ssub.s32 %s14, 1
        %p196 = scmp.lt.s32.totalorder %s19, 1
        %s197 = scalar_select %p196, %s19, 1
        %s198 = smul.addr %s197, 2
        %s199 = smul.addr %s198, 8
        %s200 = scalar_lea.vmem %s0, %s199
        %p201 = pneg %p40
        %p202 = pneg %p37
        %p203 = pneg %p61
        %p204 = pneg %p58
        %p205 = pneg %p82
        %p206 = pneg %p79
        %p207 = pneg %p103
        %p208 = pneg %p100
        %p209 = pneg %p124
        %p210 = pneg %p121
        %p211 = pneg %p150
        %p212 = pneg %p147
        %s213 = sand.u32 %s137, 1
        %s214 = scalar_lea.sflag [#allocation3], %s213
        %s215 = sand.u32 %s137, 1
        %s216 = smul.addr %s215, 16
        %s217 = scalar_lea.vmem [#allocation2], %s216
        %p218 = scmp.lt.s32.totalorder %s19, 1
        %s219 = scalar_select %p218, %s19, 1
        %s220 = smul.addr %s219, 2
        %s221 = smul.addr %s220, 8
        %s222 = scalar_lea.vmem %s0, %s221
        %v224 = vld [vmem:[%s222] sm:$0xff]
        %v225 = vld [vmem:[%s222 + $0x8] sm:$0xff]
        %v226 = vpack.c.bf16 %v224, %v224
        %v227 = vpack.c.bf16 %v225, %v225
        %v228 = vld [vmem:[%s1] sm:$0xff]
        %v229 = vld [vmem:[%s1 + $0x8] sm:$0xff]
        %v230 = vld [vmem:[%s1 + $0x10] sm:$0xff]
        %v231 = vld [vmem:[%s1 + $0x18] sm:$0xff]
        %v232 = vld [vmem:[%s1 + $0x20] sm:$0xff]
        %v233 = vld [vmem:[%s1 + $0x28] sm:$0xff]
        %v234 = vld [vmem:[%s1 + $0x30] sm:$0xff]
        %v235 = vld [vmem:[%s1 + $0x38] sm:$0xff]
        %v236 = vld [vmem:[%s1 + $0x40] sm:$0xff]
        %v237 = vld [vmem:[%s1 + $0x48] sm:$0xff]
        %v238 = vld [vmem:[%s1 + $0x50] sm:$0xff]
        %v239 = vld [vmem:[%s1 + $0x58] sm:$0xff]
        %v240 = vld [vmem:[%s1 + $0x60] sm:$0xff]
        %v241 = vld [vmem:[%s1 + $0x68] sm:$0xff]
        %v242 = vld [vmem:[%s1 + $0x70] sm:$0xff]
        %v243 = vld [vmem:[%s1 + $0x78] sm:$0xff]
        %v244 = vld [vmem:[%s1 + $0x80] sm:$0xff]
        %v245 = vld [vmem:[%s1 + $0x88] sm:$0xff]
        %v246 = vld [vmem:[%s1 + $0x90] sm:$0xff]
        %v247 = vld [vmem:[%s1 + $0x98] sm:$0xff]
        %v248 = vld [vmem:[%s1 + $0xa0] sm:$0xff]
        %v249 = vld [vmem:[%s1 + $0xa8] sm:$0xff]
        %v250 = vld [vmem:[%s1 + $0xb0] sm:$0xff]
        %v251 = vld [vmem:[%s1 + $0xb8] sm:$0xff]
        %v252 = vld [vmem:[%s1 + $0xc0] sm:$0xff]
        %v253 = vld [vmem:[%s1 + $0xc8] sm:$0xff]
        %v254 = vld [vmem:[%s1 + $0xd0] sm:$0xff]
        %v255 = vld [vmem:[%s1 + $0xd8] sm:$0xff]
        %v256 = vld [vmem:[%s1 + $0xe0] sm:$0xff]
        %v257 = vld [vmem:[%s1 + $0xe8] sm:$0xff]
        %v258 = vld [vmem:[%s1 + $0xf0] sm:$0xff]
        %v259 = vld [vmem:[%s1 + $0xf8] sm:$0xff]
        %v260 = vld [vmem:[%s1 + $0x100] sm:$0xff]
        %v261 = vld [vmem:[%s1 + $0x108] sm:$0xff]
        %v262 = vld [vmem:[%s1 + $0x110] sm:$0xff]
        %v263 = vld [vmem:[%s1 + $0x118] sm:$0xff]
        %v264 = vld [vmem:[%s1 + $0x120] sm:$0xff]
        %v265 = vld [vmem:[%s1 + $0x128] sm:$0xff]
        %v266 = vld [vmem:[%s1 + $0x130] sm:$0xff]
        %v267 = vld [vmem:[%s1 + $0x138] sm:$0xff]
        %v268 = vld [vmem:[%s1 + $0x140] sm:$0xff]
        %v269 = vld [vmem:[%s1 + $0x148] sm:$0xff]
        %v270 = vld [vmem:[%s1 + $0x150] sm:$0xff]
        %v271 = vld [vmem:[%s1 + $0x158] sm:$0xff]
        %v272 = vld [vmem:[%s1 + $0x160] sm:$0xff]
        %v273 = vld [vmem:[%s1 + $0x168] sm:$0xff]
        %v274 = vld [vmem:[%s1 + $0x170] sm:$0xff]
        %v275 = vld [vmem:[%s1 + $0x178] sm:$0xff]
        %v276 = vld [vmem:[%s1 + $0x180] sm:$0xff]
        %v277 = vld [vmem:[%s1 + $0x188] sm:$0xff]
        %v278 = vld [vmem:[%s1 + $0x190] sm:$0xff]
        %v279 = vld [vmem:[%s1 + $0x198] sm:$0xff]
        %v280 = vld [vmem:[%s1 + $0x1a0] sm:$0xff]
        %v281 = vld [vmem:[%s1 + $0x1a8] sm:$0xff]
        %v282 = vld [vmem:[%s1 + $0x1b0] sm:$0xff]
        %v283 = vld [vmem:[%s1 + $0x1b8] sm:$0xff]
        %v284 = vld [vmem:[%s1 + $0x1c0] sm:$0xff]
        %v285 = vld [vmem:[%s1 + $0x1c8] sm:$0xff]
        %v286 = vld [vmem:[%s1 + $0x1d0] sm:$0xff]
        %v287 = vld [vmem:[%s1 + $0x1d8] sm:$0xff]
        %v288 = vld [vmem:[%s1 + $0x1e0] sm:$0xff]
        %v289 = vld [vmem:[%s1 + $0x1e8] sm:$0xff]
        %v290 = vld [vmem:[%s1 + $0x1f0] sm:$0xff]
        %v291 = vld [vmem:[%s1 + $0x1f8] sm:$0xff]
        %v292 = vld [vmem:[%s1 + $0x200] sm:$0xff]
        %v293 = vld [vmem:[%s1 + $0x208] sm:$0xff]
        %v294 = vld [vmem:[%s1 + $0x210] sm:$0xff]
        %v295 = vld [vmem:[%s1 + $0x218] sm:$0xff]
        %v296 = vld [vmem:[%s1 + $0x220] sm:$0xff]
        %v297 = vld [vmem:[%s1 + $0x228] sm:$0xff]
        %v298 = vld [vmem:[%s1 + $0x230] sm:$0xff]
        %v299 = vld [vmem:[%s1 + $0x238] sm:$0xff]
        %v300 = vld [vmem:[%s2] sm:$0x3f]
        %v302 = vlaneseq
        %v303 = vshrl.u32 %v302, 7
        %v304 = vsub.s32 0, %v303
        %v305 = vrot.slane %v300, %v304
        %v306 = vlaneseq
        %v307 = vshrl.u32 %v306, 7
        %v308 = vsub.s32 1, %v307
        %v309 = vrot.slane %v300, %v308
        %v310 = vlaneseq
        %v311 = vshrl.u32 %v310, 7
        %v312 = vsub.s32 2, %v311
        %v313 = vrot.slane %v300, %v312
        %v314 = vlaneseq
        %v315 = vshrl.u32 %v314, 7
        %v316 = vsub.s32 3, %v315
        %v317 = vrot.slane %v300, %v316
        %v318 = vlaneseq
        %v319 = vshrl.u32 %v318, 7
        %v320 = vsub.s32 4, %v319
        %v321 = vrot.slane %v300, %v320
        %v322 = vlaneseq
        %v323 = vshrl.u32 %v322, 7
        %v324 = vsub.s32 5, %v323
        %v325 = vrot.slane %v300, %v324
        %v404 = vunpack.c.l.b16 %v228
        %v405 = vunpack.c.h.b16 %v228
        %v406 = vunpack.c.l.b16 %v229
        %v407 = vunpack.c.h.b16 %v229
        %v408 = vunpack.c.l.b16 %v230
        %v409 = vunpack.c.h.b16 %v230
        %v410 = vunpack.c.l.b16 %v231
        %v411 = vunpack.c.h.b16 %v231
        %v412 = vunpack.c.l.b16 %v232
        %v413 = vunpack.c.h.b16 %v232
        %v414 = vunpack.c.l.b16 %v233
        %v415 = vunpack.c.h.b16 %v233
        %v416 = vunpack.c.l.b16 %v234
        %v417 = vunpack.c.h.b16 %v234
        %v418 = vunpack.c.l.b16 %v235
        %v419 = vunpack.c.h.b16 %v235
        %v420 = vunpack.c.l.b16 %v236
        %v421 = vunpack.c.h.b16 %v236
        %v422 = vunpack.c.l.b16 %v237
        %v423 = vunpack.c.h.b16 %v237
        %v424 = vunpack.c.l.b16 %v238
        %v425 = vunpack.c.h.b16 %v238
        %v426 = vunpack.c.l.b16 %v239
        %v427 = vunpack.c.h.b16 %v239
        %v428 = vunpack.c.l.b16 %v240
        %v429 = vunpack.c.h.b16 %v240
        %v430 = vunpack.c.l.b16 %v241
        %v431 = vunpack.c.h.b16 %v241
        %v432 = vunpack.c.l.b16 %v242
        %v433 = vunpack.c.h.b16 %v242
        %v434 = vunpack.c.l.b16 %v243
        %v435 = vunpack.c.h.b16 %v243
        %v436 = vunpack.c.l.b16 %v244
        %v437 = vunpack.c.h.b16 %v244
        %v438 = vunpack.c.l.b16 %v245
        %v439 = vunpack.c.h.b16 %v245
        %v440 = vunpack.c.l.b16 %v246
        %v441 = vunpack.c.h.b16 %v246
        %v442 = vunpack.c.l.b16 %v247
        %v443 = vunpack.c.h.b16 %v247
        %v444 = vunpack.c.l.b16 %v248
        %v445 = vunpack.c.h.b16 %v248
        %v446 = vunpack.c.l.b16 %v249
        %v447 = vunpack.c.h.b16 %v249
        %v448 = vunpack.c.l.b16 %v250
        %v449 = vunpack.c.h.b16 %v250
        %v450 = vunpack.c.l.b16 %v251
        %v451 = vunpack.c.h.b16 %v251
        %v452 = vunpack.c.l.b16 %v252
        %v453 = vunpack.c.h.b16 %v252
        %v454 = vunpack.c.l.b16 %v253
        %v455 = vunpack.c.h.b16 %v253
        %v456 = vunpack.c.l.b16 %v254
        %v457 = vunpack.c.h.b16 %v254
        %v458 = vunpack.c.l.b16 %v255
        %v459 = vunpack.c.h.b16 %v255
        %v460 = vunpack.c.l.b16 %v256
        %v461 = vunpack.c.h.b16 %v256
        %v462 = vunpack.c.l.b16 %v257
        %v463 = vunpack.c.h.b16 %v257
        %v464 = vunpack.c.l.b16 %v258
        %v465 = vunpack.c.h.b16 %v258
        %v466 = vunpack.c.l.b16 %v259
        %v467 = vunpack.c.h.b16 %v259
        %v468 = vunpack.c.l.b16 %v260
        %v469 = vunpack.c.h.b16 %v260
        %v470 = vunpack.c.l.b16 %v261
        %v471 = vunpack.c.h.b16 %v261
        %v472 = vunpack.c.l.b16 %v262
        %v473 = vunpack.c.h.b16 %v262
        %v474 = vunpack.c.l.b16 %v263
        %v475 = vunpack.c.h.b16 %v263
        %v476 = vunpack.c.l.b16 %v264
        %v477 = vunpack.c.h.b16 %v264
        %v478 = vunpack.c.l.b16 %v265
        %v479 = vunpack.c.h.b16 %v265
        %v480 = vunpack.c.l.b16 %v266
        %v481 = vunpack.c.h.b16 %v266
        %v482 = vunpack.c.l.b16 %v267
        %v483 = vunpack.c.h.b16 %v267
        %v484 = vunpack.c.l.b16 %v268
        %v485 = vunpack.c.h.b16 %v268
        %v486 = vunpack.c.l.b16 %v269
        %v487 = vunpack.c.h.b16 %v269
        %v488 = vunpack.c.l.b16 %v270
        %v489 = vunpack.c.h.b16 %v270
        %v490 = vunpack.c.l.b16 %v271
        %v491 = vunpack.c.h.b16 %v271
        %v492 = vunpack.c.l.b16 %v272
        %v493 = vunpack.c.h.b16 %v272
        %v494 = vunpack.c.l.b16 %v273
        %v495 = vunpack.c.h.b16 %v273
        %v496 = vunpack.c.l.b16 %v274
        %v497 = vunpack.c.h.b16 %v274
        %v498 = vunpack.c.l.b16 %v275
        %v499 = vunpack.c.h.b16 %v275
        %v500 = vunpack.c.l.b16 %v276
        %v501 = vunpack.c.h.b16 %v276
        %v502 = vunpack.c.l.b16 %v277
        %v503 = vunpack.c.h.b16 %v277
        %v504 = vunpack.c.l.b16 %v278
        %v505 = vunpack.c.h.b16 %v278
        %v506 = vunpack.c.l.b16 %v279
        %v507 = vunpack.c.h.b16 %v279
        %v508 = vunpack.c.l.b16 %v280
        %v509 = vunpack.c.h.b16 %v280
        %v510 = vunpack.c.l.b16 %v281
        %v511 = vunpack.c.h.b16 %v281
        %v512 = vunpack.c.l.b16 %v282
        %v513 = vunpack.c.h.b16 %v282
        %v514 = vunpack.c.l.b16 %v283
        %v515 = vunpack.c.h.b16 %v283
        %v516 = vunpack.c.l.b16 %v284
        %v517 = vunpack.c.h.b16 %v284
        %v518 = vunpack.c.l.b16 %v285
        %v519 = vunpack.c.h.b16 %v285
        %v520 = vunpack.c.l.b16 %v286
        %v521 = vunpack.c.h.b16 %v286
        %v522 = vunpack.c.l.b16 %v287
        %v523 = vunpack.c.h.b16 %v287
        %v524 = vunpack.c.l.b16 %v288
        %v525 = vunpack.c.h.b16 %v288
        %v526 = vunpack.c.l.b16 %v289
        %v527 = vunpack.c.h.b16 %v289
        %v528 = vunpack.c.l.b16 %v290
        %v529 = vunpack.c.h.b16 %v290
        %v530 = vunpack.c.l.b16 %v291
        %v531 = vunpack.c.h.b16 %v291
        %v532 = vunpack.c.l.b16 %v292
        %v533 = vunpack.c.h.b16 %v292
        %v534 = vunpack.c.l.b16 %v293
        %v535 = vunpack.c.h.b16 %v293
        %v536 = vunpack.c.l.b16 %v294
        %v537 = vunpack.c.h.b16 %v294
        %v538 = vunpack.c.l.b16 %v295
        %v539 = vunpack.c.h.b16 %v295
        %v540 = vunpack.c.l.b16 %v296
        %v541 = vunpack.c.h.b16 %v296
        %v542 = vunpack.c.l.b16 %v297
        %v543 = vunpack.c.h.b16 %v297
        %v544 = vunpack.c.l.b16 %v298
        %v545 = vunpack.c.h.b16 %v298
        %v546 = vunpack.c.l.b16 %v299
        %v547 = vunpack.c.h.b16 %v299
        %v548 = vpack.c.b16 %v410, %v404
        %v549 = vpack.c.b16 %v411, %v405
        %v550 = vpack.c.b16 %v412, %v406
        %v551 = vpack.c.b16 %v413, %v407
        %v552 = vpack.c.b16 %v414, %v408
        %v553 = vpack.c.b16 %v415, %v409
        %v554 = vpack.c.b16 %v422, %v416
        %v555 = vpack.c.b16 %v423, %v417
        %v556 = vpack.c.b16 %v424, %v418
        %v557 = vpack.c.b16 %v425, %v419
        %v558 = vpack.c.b16 %v426, %v420
        %v559 = vpack.c.b16 %v427, %v421
        %v560 = vpack.c.b16 %v434, %v428
        %v561 = vpack.c.b16 %v435, %v429
        %v562 = vpack.c.b16 %v436, %v430
        %v563 = vpack.c.b16 %v437, %v431
        %v564 = vpack.c.b16 %v438, %v432
        %v565 = vpack.c.b16 %v439, %v433
        %v566 = vpack.c.b16 %v446, %v440
        %v567 = vpack.c.b16 %v447, %v441
        %v568 = vpack.c.b16 %v448, %v442
        %v569 = vpack.c.b16 %v449, %v443
        %v570 = vpack.c.b16 %v450, %v444
        %v571 = vpack.c.b16 %v451, %v445
        %v572 = vpack.c.b16 %v458, %v452
        %v573 = vpack.c.b16 %v459, %v453
        %v574 = vpack.c.b16 %v460, %v454
        %v575 = vpack.c.b16 %v461, %v455
        %v576 = vpack.c.b16 %v462, %v456
        %v577 = vpack.c.b16 %v463, %v457
        %v578 = vpack.c.b16 %v470, %v464
        %v579 = vpack.c.b16 %v471, %v465
        %v580 = vpack.c.b16 %v472, %v466
        %v581 = vpack.c.b16 %v473, %v467
        %v582 = vpack.c.b16 %v474, %v468
        %v583 = vpack.c.b16 %v475, %v469
        %v584 = vpack.c.b16 %v482, %v476
        %v585 = vpack.c.b16 %v483, %v477
        %v586 = vpack.c.b16 %v484, %v478
        %v587 = vpack.c.b16 %v485, %v479
        %v588 = vpack.c.b16 %v486, %v480
        %v589 = vpack.c.b16 %v487, %v481
        %v590 = vpack.c.b16 %v494, %v488
        %v591 = vpack.c.b16 %v495, %v489
        %v592 = vpack.c.b16 %v496, %v490
        %v593 = vpack.c.b16 %v497, %v491
        %v594 = vpack.c.b16 %v498, %v492
        %v595 = vpack.c.b16 %v499, %v493
        %v596 = vpack.c.b16 %v506, %v500
        %v597 = vpack.c.b16 %v507, %v501
        %v598 = vpack.c.b16 %v508, %v502
        %v599 = vpack.c.b16 %v509, %v503
        %v600 = vpack.c.b16 %v510, %v504
        %v601 = vpack.c.b16 %v511, %v505
        %v602 = vpack.c.b16 %v518, %v512
        %v603 = vpack.c.b16 %v519, %v513
        %v604 = vpack.c.b16 %v520, %v514
        %v605 = vpack.c.b16 %v521, %v515
        %v606 = vpack.c.b16 %v522, %v516
        %v607 = vpack.c.b16 %v523, %v517
        %v608 = vpack.c.b16 %v530, %v524
        %v609 = vpack.c.b16 %v531, %v525
        %v610 = vpack.c.b16 %v532, %v526
        %v611 = vpack.c.b16 %v533, %v527
        %v612 = vpack.c.b16 %v534, %v528
        %v613 = vpack.c.b16 %v535, %v529
        %v614 = vpack.c.b16 %v542, %v536
        %v615 = vpack.c.b16 %v543, %v537
        %v616 = vpack.c.b16 %v544, %v538
        %v617 = vpack.c.b16 %v545, %v539
        %v618 = vpack.c.b16 %v546, %v540
        %v619 = vpack.c.b16 %v547, %v541
        %vm692 = vcmask 523264
        %v694 = vsel %vm692, %v227, 0
        %696 = vmatprep.subr.bf16.mxu0 %v549
        %697 = vmatpush1.bf16.msra.mxu0 %v548
        %698 = vmatprep.subr.bf16.mxu0 %v555
        %699 = vmatpush1.bf16.msra.mxu0 %v554
        %700 = vmatprep.subr.bf16.mxu0 %v561
        %701 = vmatpush1.bf16.msra.mxu0 %v560
        %702 = vmatprep.subr.bf16.mxu0 %v567
        %703 = vmatpush1.bf16.msra.mxu0 %v566
        %704 = vmatprep.subr.bf16.mxu0 %v573
        %705 = vmatpush1.bf16.msra.mxu0 %v572
        %706 = vmatprep.subr.bf16.mxu0 %v579
        %707 = vmatpush1.bf16.msra.mxu0 %v578
        %708 = vmatprep.subr.bf16.mxu0 %v585
        %709 = vmatpush1.bf16.msra.mxu0 %v584
        %710 = vmatprep.subr.bf16.mxu0 %v591
        %711 = vmatpush1.bf16.msra.mxu0 %v590
        %712 = vmatprep.subr.bf16.mxu0 %v597
        %713 = vmatpush1.bf16.msra.mxu0 %v596
        %714 = vmatprep.subr.bf16.mxu0 %v603
        %715 = vmatpush1.bf16.msra.mxu0 %v602
        %716 = vmatprep.subr.bf16.mxu0 %v609
        %717 = vmatpush1.bf16.msra.mxu0 %v608
        %718 = vmatprep.subr.bf16.mxu0 %v615
        %719 = vmatpush1.bf16.msra.mxu0 %v614
        %720 = vmatprep.subr.bf16.mxu0 0
        %721 = vmatpush1.bf16.msra.mxu0 0
        %722 = vmatprep.subr.bf16.mxu0 0
        %723 = vmatpush1.bf16.msra.mxu0 0
        %724 = vmatprep.subr.bf16.mxu0 0
        %725 = vmatpush1.bf16.msra.mxu0 0
        %726 = vmatprep.subr.bf16.mxu0 0
        %727 = vmatpush1.bf16.msra.mxu0 0
        %728 = vmatprep.mubr.bf16.mxu0 %v694
        %729 = vmatmul.mubr.bf16.gmra.mrb[0].mxu0 %v226
        %v730 = vpop.f32.mrb[0].mxu0
        %v731 = vadd.f32 %v305, %v730
        %v732 = vpop.f32.mrb[0].mxu0
        %v733 = vadd.f32 %v309, %v732
        %v734 = vpop.f32.mrb[0].mxu0
        %v735 = vpop.f32.mrb[0].mxu0
        %736 = vdwg.mxu0
        %737 = vmatprep.subr.bf16.mxu0 %v551
        %738 = vmatpush1.bf16.msra.mxu0 %v550
        %739 = vmatprep.subr.bf16.mxu0 %v557
        %740 = vmatpush1.bf16.msra.mxu0 %v556
        %741 = vmatprep.subr.bf16.mxu0 %v563
        %742 = vmatpush1.bf16.msra.mxu0 %v562
        %743 = vmatprep.subr.bf16.mxu0 %v569
        %744 = vmatpush1.bf16.msra.mxu0 %v568
        %745 = vmatprep.subr.bf16.mxu0 %v575
        %746 = vmatpush1.bf16.msra.mxu0 %v574
        %747 = vmatprep.subr.bf16.mxu0 %v581
        %748 = vmatpush1.bf16.msra.mxu0 %v580
        %749 = vmatprep.subr.bf16.mxu0 %v587
        %750 = vmatpush1.bf16.msra.mxu0 %v586
        %751 = vmatprep.subr.bf16.mxu0 %v593
        %752 = vmatpush1.bf16.msra.mxu0 %v592
        %753 = vmatprep.subr.bf16.mxu0 %v599
        %754 = vmatpush1.bf16.msra.mxu0 %v598
        %755 = vmatprep.subr.bf16.mxu0 %v605
        %756 = vmatpush1.bf16.msra.mxu0 %v604
        %757 = vmatprep.subr.bf16.mxu0 %v611
        %758 = vmatpush1.bf16.msra.mxu0 %v610
        %759 = vmatprep.subr.bf16.mxu0 %v617
        %760 = vmatpush1.bf16.msra.mxu0 %v616
        %761 = vmatprep.subr.bf16.mxu0 0
        %762 = vmatpush1.bf16.msra.mxu0 0
        %763 = vmatprep.subr.bf16.mxu0 0
        %764 = vmatpush1.bf16.msra.mxu0 0
        %765 = vmatprep.subr.bf16.mxu0 0
        %766 = vmatpush1.bf16.msra.mxu0 0
        %767 = vmatprep.subr.bf16.mxu0 0
        %768 = vmatpush1.bf16.msra.mxu0 0
        %769 = vmatprep.mubr.bf16.mxu0 %v694
        %770 = vmatmul.mubr.bf16.gmra.mrb[0].mxu0 %v226
        %v771 = vpop.f32.mrb[0].mxu0
        %v772 = vadd.f32 %v313, %v771
        %v773 = vpop.f32.mrb[0].mxu0
        %v774 = vadd.f32 %v317, %v773
        %v775 = vpop.f32.mrb[0].mxu0
        %v776 = vpop.f32.mrb[0].mxu0
        %777 = vdwg.mxu0
        %778 = vmatprep.subr.bf16.mxu0 %v553
        %779 = vmatpush1.bf16.msra.mxu0 %v552
        %780 = vmatprep.subr.bf16.mxu0 %v559
        %781 = vmatpush1.bf16.msra.mxu0 %v558
        %782 = vmatprep.subr.bf16.mxu0 %v565
        %783 = vmatpush1.bf16.msra.mxu0 %v564
        %784 = vmatprep.subr.bf16.mxu0 %v571
        %785 = vmatpush1.bf16.msra.mxu0 %v570
        %786 = vmatprep.subr.bf16.mxu0 %v577
        %787 = vmatpush1.bf16.msra.mxu0 %v576
        %788 = vmatprep.subr.bf16.mxu0 %v583
        %789 = vmatpush1.bf16.msra.mxu0 %v582
        %790 = vmatprep.subr.bf16.mxu0 %v589
        %791 = vmatpush1.bf16.msra.mxu0 %v588
        %792 = vmatprep.subr.bf16.mxu0 %v595
        %793 = vmatpush1.bf16.msra.mxu0 %v594
        %794 = vmatprep.subr.bf16.mxu0 %v601
        %795 = vmatpush1.bf16.msra.mxu0 %v600
        %796 = vmatprep.subr.bf16.mxu0 %v607
        %797 = vmatpush1.bf16.msra.mxu0 %v606
        %798 = vmatprep.subr.bf16.mxu0 %v613
        %799 = vmatpush1.bf16.msra.mxu0 %v612
        %800 = vmatprep.subr.bf16.mxu0 %v619
        %801 = vmatpush1.bf16.msra.mxu0 %v618
        %802 = vmatprep.subr.bf16.mxu0 0
        %803 = vmatpush1.bf16.msra.mxu0 0
        %804 = vmatprep.subr.bf16.mxu0 0
        %805 = vmatpush1.bf16.msra.mxu0 0
        %806 = vmatprep.subr.bf16.mxu0 0
        %807 = vmatpush1.bf16.msra.mxu0 0
        %808 = vmatprep.subr.bf16.mxu0 0
        %809 = vmatpush1.bf16.msra.mxu0 0
        %810 = vmatprep.mubr.bf16.mxu0 %v694
        %811 = vmatmul.mubr.bf16.gmra.mrb[0].mxu0 %v226
        %v812 = vpop.f32.mrb[0].mxu0
        %v813 = vadd.f32 %v321, %v812
        %v814 = vpop.f32.mrb[0].mxu0
        %v815 = vadd.f32 %v325, %v814
        %v816 = vpop.f32.mrb[0].mxu0
        %v817 = vpop.f32.mrb[0].mxu0
        %818 = vdwg.mxu0
        %v819 = vmax.f32 %v731, 0.0
        %v820 = vmax.f32 %v733, 0.0
        %v821 = vmax.f32 %v772, 0.0
        %v822 = vmax.f32 %v774, 0.0
        %v823 = vmax.f32 %v813, 0.0
        %v824 = vmax.f32 %v815, 0.0
        %v825 = vpack.c.bf16 %v819, %v819
        %v826 = vpack.c.bf16 %v820, %v820
        %v827 = vpack.c.bf16 %v821, %v821
        %v828 = vpack.c.bf16 %v822, %v822
        %v829 = vpack.c.bf16 %v823, %v823
        %v830 = vpack.c.bf16 %v824, %v824
        %v831 = vld [vmem:[%s3] sm:$0xff]
        %v832 = vld [vmem:[%s3 + $0x8] sm:$0xff]
        %v833 = vld [vmem:[%s3 + $0x10] sm:$0xff]
        %v834 = vld [vmem:[%s3 + $0x18] sm:$0xff]
        %v835 = vld [vmem:[%s3 + $0x20] sm:$0xff]
        %v836 = vld [vmem:[%s3 + $0x28] sm:$0xff]
        %v837 = vld [vmem:[%s3 + $0x30] sm:$0xff]
        %v838 = vld [vmem:[%s3 + $0x38] sm:$0xff]
        %v839 = vld [vmem:[%s3 + $0x40] sm:$0xff]
        %v840 = vld [vmem:[%s3 + $0x48] sm:$0xff]
        %v841 = vld [vmem:[%s3 + $0x50] sm:$0xff]
        %v842 = vld [vmem:[%s3 + $0x58] sm:$0xff]
        %v843 = vld [vmem:[%s3 + $0x60] sm:$0xff]
        %v844 = vld [vmem:[%s3 + $0x68] sm:$0xff]
        %v845 = vld [vmem:[%s3 + $0x70] sm:$0xff]
        %v846 = vld [vmem:[%s3 + $0x78] sm:$0xff]
        %v847 = vld [vmem:[%s3 + $0x80] sm:$0xff]
        %v848 = vld [vmem:[%s3 + $0x88] sm:$0xff]
        %v849 = vld [vmem:[%s3 + $0x90] sm:$0xff]
        %v850 = vld [vmem:[%s3 + $0x98] sm:$0xff]
        %v851 = vld [vmem:[%s3 + $0xa0] sm:$0xff]
        %v852 = vld [vmem:[%s3 + $0xa8] sm:$0xff]
        %v853 = vld [vmem:[%s3 + $0xb0] sm:$0xff]
        %v854 = vld [vmem:[%s3 + $0xb8] sm:$0xff]
        %v855 = vld [vmem:[%s3 + $0xc0] sm:$0xff]
        %v856 = vld [vmem:[%s3 + $0xc8] sm:$0xff]
        %v857 = vld [vmem:[%s3 + $0xd0] sm:$0xff]
        %v858 = vld [vmem:[%s3 + $0xd8] sm:$0xff]
        %v859 = vld [vmem:[%s3 + $0xe0] sm:$0xff]
        %v860 = vld [vmem:[%s3 + $0xe8] sm:$0xff]
        %v861 = vld [vmem:[%s3 + $0xf0] sm:$0xff]
        %v862 = vld [vmem:[%s3 + $0xf8] sm:$0xff]
        %v863 = vld [vmem:[%s3 + $0x100] sm:$0xff]
        %v864 = vld [vmem:[%s3 + $0x108] sm:$0xff]
        %v865 = vld [vmem:[%s3 + $0x110] sm:$0xff]
        %v866 = vld [vmem:[%s3 + $0x118] sm:$0xff]
        %v867 = vld [vmem:[%s3 + $0x120] sm:$0xff]
        %v868 = vld [vmem:[%s3 + $0x128] sm:$0xff]
        %v869 = vld [vmem:[%s3 + $0x130] sm:$0xff]
        %v870 = vld [vmem:[%s3 + $0x138] sm:$0xff]
        %v871 = vld [vmem:[%s3 + $0x140] sm:$0xff]
        %v872 = vld [vmem:[%s3 + $0x148] sm:$0xff]
        %v873 = vld [vmem:[%s3 + $0x150] sm:$0xff]
        %v874 = vld [vmem:[%s3 + $0x158] sm:$0xff]
        %v875 = vld [vmem:[%s3 + $0x160] sm:$0xff]
        %v876 = vld [vmem:[%s3 + $0x168] sm:$0xff]
        %v877 = vld [vmem:[%s3 + $0x170] sm:$0xff]
        %v878 = vld [vmem:[%s3 + $0x178] sm:$0xff]
        %v879 = vld [vmem:[%s3 + $0x180] sm:$0xff]
        %v880 = vld [vmem:[%s3 + $0x188] sm:$0xff]
        %v881 = vld [vmem:[%s3 + $0x190] sm:$0xff]
        %v882 = vld [vmem:[%s3 + $0x198] sm:$0xff]
        %v883 = vld [vmem:[%s3 + $0x1a0] sm:$0xff]
        %v884 = vld [vmem:[%s3 + $0x1a8] sm:$0xff]
        %v885 = vld [vmem:[%s3 + $0x1b0] sm:$0xff]
        %v886 = vld [vmem:[%s3 + $0x1b8] sm:$0xff]
        %v887 = vld [vmem:[%s3 + $0x1c0] sm:$0xff]
        %v888 = vld [vmem:[%s3 + $0x1c8] sm:$0xff]
        %v889 = vld [vmem:[%s3 + $0x1d0] sm:$0xff]
        %v890 = vld [vmem:[%s3 + $0x1d8] sm:$0xff]
        %v891 = vld [vmem:[%s3 + $0x1e0] sm:$0xff]
        %v892 = vld [vmem:[%s3 + $0x1e8] sm:$0xff]
        %v893 = vld [vmem:[%s3 + $0x1f0] sm:$0xff]
        %v894 = vld [vmem:[%s3 + $0x1f8] sm:$0xff]
        %v895 = vld [vmem:[%s3 + $0x200] sm:$0xff]
        %v896 = vld [vmem:[%s3 + $0x208] sm:$0xff]
        %v897 = vld [vmem:[%s3 + $0x210] sm:$0xff]
        %v898 = vld [vmem:[%s3 + $0x218] sm:$0xff]
        %v899 = vld [vmem:[%s3 + $0x220] sm:$0xff]
        %v900 = vld [vmem:[%s3 + $0x228] sm:$0xff]
        %v901 = vld [vmem:[%s3 + $0x230] sm:$0xff]
        %v902 = vld [vmem:[%s3 + $0x238] sm:$0xff]
        %v903 = vld [vmem:[%s3 + $0x240] sm:$0xff]
        %v904 = vld [vmem:[%s3 + $0x248] sm:$0xff]
        %v905 = vld [vmem:[%s3 + $0x250] sm:$0xff]
        %v906 = vld [vmem:[%s3 + $0x258] sm:$0xff]
        %v907 = vld [vmem:[%s3 + $0x260] sm:$0xff]
        %v908 = vld [vmem:[%s3 + $0x268] sm:$0xff]
        %v909 = vld [vmem:[%s3 + $0x270] sm:$0xff]
        %v910 = vld [vmem:[%s3 + $0x278] sm:$0xff]
        %v911 = vld [vmem:[%s3 + $0x280] sm:$0xff]
        %v912 = vld [vmem:[%s3 + $0x288] sm:$0xff]
        %v913 = vld [vmem:[%s3 + $0x290] sm:$0xff]
        %v914 = vld [vmem:[%s3 + $0x298] sm:$0xff]
        %v915 = vld [vmem:[%s3 + $0x2a0] sm:$0xff]
        %v916 = vld [vmem:[%s3 + $0x2a8] sm:$0xff]
        %v917 = vld [vmem:[%s3 + $0x2b0] sm:$0xff]
        %v918 = vld [vmem:[%s3 + $0x2b8] sm:$0xff]
        %v919 = vld [vmem:[%s3 + $0x2c0] sm:$0xff]
        %v920 = vld [vmem:[%s3 + $0x2c8] sm:$0xff]
        %v921 = vld [vmem:[%s3 + $0x2d0] sm:$0xff]
        %v922 = vld [vmem:[%s3 + $0x2d8] sm:$0xff]
        %v923 = vld [vmem:[%s3 + $0x2e0] sm:$0xff]
        %v924 = vld [vmem:[%s3 + $0x2e8] sm:$0xff]
        %v925 = vld [vmem:[%s3 + $0x2f0] sm:$0xff]
        %v926 = vld [vmem:[%s3 + $0x2f8] sm:$0xff]
        %v927 = vld [vmem:[%s4] sm:$0x3]
        %v929 = vlaneseq
        %v930 = vshrl.u32 %v929, 7
        %v931 = vsub.s32 0, %v930
        %v932 = vrot.slane %v927, %v931
        %v933 = vlaneseq
        %v934 = vshrl.u32 %v933, 7
        %v935 = vsub.s32 1, %v934
        %v936 = vrot.slane %v927, %v935
        %v1035 = vunpack.c.l.b16 %v831
        %v1036 = vunpack.c.h.b16 %v831
        %v1037 = vunpack.c.l.b16 %v832
        %v1038 = vunpack.c.h.b16 %v832
        %v1039 = vunpack.c.l.b16 %v833
        %v1040 = vunpack.c.h.b16 %v833
        %v1041 = vunpack.c.l.b16 %v834
        %v1042 = vunpack.c.h.b16 %v834
        %v1043 = vunpack.c.l.b16 %v835
        %v1044 = vunpack.c.h.b16 %v835
        %v1045 = vunpack.c.l.b16 %v836
        %v1046 = vunpack.c.h.b16 %v836
        %v1047 = vunpack.c.l.b16 %v837
        %v1048 = vunpack.c.h.b16 %v837
        %v1049 = vunpack.c.l.b16 %v838
        %v1050 = vunpack.c.h.b16 %v838
        %v1051 = vunpack.c.l.b16 %v839
        %v1052 = vunpack.c.h.b16 %v839
        %v1053 = vunpack.c.l.b16 %v840
        %v1054 = vunpack.c.h.b16 %v840
        %v1055 = vunpack.c.l.b16 %v841
        %v1056 = vunpack.c.h.b16 %v841
        %v1057 = vunpack.c.l.b16 %v842
        %v1058 = vunpack.c.h.b16 %v842
        %v1059 = vunpack.c.l.b16 %v843
        %v1060 = vunpack.c.h.b16 %v843
        %v1061 = vunpack.c.l.b16 %v844
        %v1062 = vunpack.c.h.b16 %v844
        %v1063 = vunpack.c.l.b16 %v845
        %v1064 = vunpack.c.h.b16 %v845
        %v1065 = vunpack.c.l.b16 %v846
        %v1066 = vunpack.c.h.b16 %v846
        %v1067 = vunpack.c.l.b16 %v847
        %v1068 = vunpack.c.h.b16 %v847
        %v1069 = vunpack.c.l.b16 %v848
        %v1070 = vunpack.c.h.b16 %v848
        %v1071 = vunpack.c.l.b16 %v849
        %v1072 = vunpack.c.h.b16 %v849
        %v1073 = vunpack.c.l.b16 %v850
        %v1074 = vunpack.c.h.b16 %v850
        %v1075 = vunpack.c.l.b16 %v851
        %v1076 = vunpack.c.h.b16 %v851
        %v1077 = vunpack.c.l.b16 %v852
        %v1078 = vunpack.c.h.b16 %v852
        %v1079 = vunpack.c.l.b16 %v853
        %v1080 = vunpack.c.h.b16 %v853
        %v1081 = vunpack.c.l.b16 %v854
        %v1082 = vunpack.c.h.b16 %v854
        %v1083 = vunpack.c.l.b16 %v855
        %v1084 = vunpack.c.h.b16 %v855
        %v1085 = vunpack.c.l.b16 %v856
        %v1086 = vunpack.c.h.b16 %v856
        %v1087 = vunpack.c.l.b16 %v857
        %v1088 = vunpack.c.h.b16 %v857
        %v1089 = vunpack.c.l.b16 %v858
        %v1090 = vunpack.c.h.b16 %v858
        %v1091 = vunpack.c.l.b16 %v859
        %v1092 = vunpack.c.h.b16 %v859
        %v1093 = vunpack.c.l.b16 %v860
        %v1094 = vunpack.c.h.b16 %v860
        %v1095 = vunpack.c.l.b16 %v861
        %v1096 = vunpack.c.h.b16 %v861
        %v1097 = vunpack.c.l.b16 %v862
        %v1098 = vunpack.c.h.b16 %v862
        %v1099 = vunpack.c.l.b16 %v863
        %v1100 = vunpack.c.h.b16 %v863
        %v1101 = vunpack.c.l.b16 %v864
        %v1102 = vunpack.c.h.b16 %v864
        %v1103 = vunpack.c.l.b16 %v865
        %v1104 = vunpack.c.h.b16 %v865
        %v1105 = vunpack.c.l.b16 %v866
        %v1106 = vunpack.c.h.b16 %v866
        %v1107 = vunpack.c.l.b16 %v867
        %v1108 = vunpack.c.h.b16 %v867
        %v1109 = vunpack.c.l.b16 %v868
        %v1110 = vunpack.c.h.b16 %v868
        %v1111 = vunpack.c.l.b16 %v869
        %v1112 = vunpack.c.h.b16 %v869
        %v1113 = vunpack.c.l.b16 %v870
        %v1114 = vunpack.c.h.b16 %v870
        %v1115 = vunpack.c.l.b16 %v871
        %v1116 = vunpack.c.h.b16 %v871
        %v1117 = vunpack.c.l.b16 %v872
        %v1118 = vunpack.c.h.b16 %v872
        %v1119 = vunpack.c.l.b16 %v873
        %v1120 = vunpack.c.h.b16 %v873
        %v1121 = vunpack.c.l.b16 %v874
        %v1122 = vunpack.c.h.b16 %v874
        %v1123 = vunpack.c.l.b16 %v875
        %v1124 = vunpack.c.h.b16 %v875
        %v1125 = vunpack.c.l.b16 %v876
        %v1126 = vunpack.c.h.b16 %v876
        %v1127 = vunpack.c.l.b16 %v877
        %v1128 = vunpack.c.h.b16 %v877
        %v1129 = vunpack.c.l.b16 %v878
        %v1130 = vunpack.c.h.b16 %v878
        %v1131 = vunpack.c.l.b16 %v879
        %v1132 = vunpack.c.h.b16 %v879
        %v1133 = vunpack.c.l.b16 %v880
        %v1134 = vunpack.c.h.b16 %v880
        %v1135 = vunpack.c.l.b16 %v881
        %v1136 = vunpack.c.h.b16 %v881
        %v1137 = vunpack.c.l.b16 %v882
        %v1138 = vunpack.c.h.b16 %v882
        %v1139 = vunpack.c.l.b16 %v883
        %v1140 = vunpack.c.h.b16 %v883
        %v1141 = vunpack.c.l.b16 %v884
        %v1142 = vunpack.c.h.b16 %v884
        %v1143 = vunpack.c.l.b16 %v885
        %v1144 = vunpack.c.h.b16 %v885
        %v1145 = vunpack.c.l.b16 %v886
        %v1146 = vunpack.c.h.b16 %v886
        %v1147 = vunpack.c.l.b16 %v887
        %v1148 = vunpack.c.h.b16 %v887
        %v1149 = vunpack.c.l.b16 %v888
        %v1150 = vunpack.c.h.b16 %v888
        %v1151 = vunpack.c.l.b16 %v889
        %v1152 = vunpack.c.h.b16 %v889
        %v1153 = vunpack.c.l.b16 %v890
        %v1154 = vunpack.c.h.b16 %v890
        %v1155 = vunpack.c.l.b16 %v891
        %v1156 = vunpack.c.h.b16 %v891
        %v1157 = vunpack.c.l.b16 %v892
        %v1158 = vunpack.c.h.b16 %v892
        %v1159 = vunpack.c.l.b16 %v893
        %v1160 = vunpack.c.h.b16 %v893
        %v1161 = vunpack.c.l.b16 %v894
        %v1162 = vunpack.c.h.b16 %v894
        %v1163 = vunpack.c.l.b16 %v895
        %v1164 = vunpack.c.h.b16 %v895
        %v1165 = vunpack.c.l.b16 %v896
        %v1166 = vunpack.c.h.b16 %v896
        %v1167 = vunpack.c.l.b16 %v897
        %v1168 = vunpack.c.h.b16 %v897
        %v1169 = vunpack.c.l.b16 %v898
        %v1170 = vunpack.c.h.b16 %v898
        %v1171 = vunpack.c.l.b16 %v899
        %v1172 = vunpack.c.h.b16 %v899
        %v1173 = vunpack.c.l.b16 %v900
        %v1174 = vunpack.c.h.b16 %v900
        %v1175 = vunpack.c.l.b16 %v901
        %v1176 = vunpack.c.h.b16 %v901
        %v1177 = vunpack.c.l.b16 %v902
        %v1178 = vunpack.c.h.b16 %v902
        %v1179 = vunpack.c.l.b16 %v903
        %v1180 = vunpack.c.h.b16 %v903
        %v1181 = vunpack.c.l.b16 %v904
        %v1182 = vunpack.c.h.b16 %v904
        %v1183 = vunpack.c.l.b16 %v905
        %v1184 = vunpack.c.h.b16 %v905
        %v1185 = vunpack.c.l.b16 %v906
        %v1186 = vunpack.c.h.b16 %v906
        %v1187 = vunpack.c.l.b16 %v907
        %v1188 = vunpack.c.h.b16 %v907
        %v1189 = vunpack.c.l.b16 %v908
        %v1190 = vunpack.c.h.b16 %v908
        %v1191 = vunpack.c.l.b16 %v909
        %v1192 = vunpack.c.h.b16 %v909
        %v1193 = vunpack.c.l.b16 %v910
        %v1194 = vunpack.c.h.b16 %v910
        %v1195 = vunpack.c.l.b16 %v911
        %v1196 = vunpack.c.h.b16 %v911
        %v1197 = vunpack.c.l.b16 %v912
        %v1198 = vunpack.c.h.b16 %v912
        %v1199 = vunpack.c.l.b16 %v913
        %v1200 = vunpack.c.h.b16 %v913
        %v1201 = vunpack.c.l.b16 %v914
        %v1202 = vunpack.c.h.b16 %v914
        %v1203 = vunpack.c.l.b16 %v915
        %v1204 = vunpack.c.h.b16 %v915
        %v1205 = vunpack.c.l.b16 %v916
        %v1206 = vunpack.c.h.b16 %v916
        %v1207 = vunpack.c.l.b16 %v917
        %v1208 = vunpack.c.h.b16 %v917
        %v1209 = vunpack.c.l.b16 %v918
        %v1210 = vunpack.c.h.b16 %v918
        %v1211 = vunpack.c.l.b16 %v919
        %v1212 = vunpack.c.h.b16 %v919
        %v1213 = vunpack.c.l.b16 %v920
        %v1214 = vunpack.c.h.b16 %v920
        %v1215 = vunpack.c.l.b16 %v921
        %v1216 = vunpack.c.h.b16 %v921
        %v1217 = vunpack.c.l.b16 %v922
        %v1218 = vunpack.c.h.b16 %v922
        %v1219 = vunpack.c.l.b16 %v923
        %v1220 = vunpack.c.h.b16 %v923
        %v1221 = vunpack.c.l.b16 %v924
        %v1222 = vunpack.c.h.b16 %v924
        %v1223 = vunpack.c.l.b16 %v925
        %v1224 = vunpack.c.h.b16 %v925
        %v1225 = vunpack.c.l.b16 %v926
        %v1226 = vunpack.c.h.b16 %v926
        %v1227 = vpack.c.b16 %v1037, %v1035
        %v1228 = vpack.c.b16 %v1038, %v1036
        %v1229 = vpack.c.b16 %v1041, %v1039
        %v1230 = vpack.c.b16 %v1042, %v1040
        %v1231 = vpack.c.b16 %v1045, %v1043
        %v1232 = vpack.c.b16 %v1046, %v1044
        %v1233 = vpack.c.b16 %v1049, %v1047
        %v1234 = vpack.c.b16 %v1050, %v1048
        %v1235 = vpack.c.b16 %v1053, %v1051
        %v1236 = vpack.c.b16 %v1054, %v1052
        %v1237 = vpack.c.b16 %v1057, %v1055
        %v1238 = vpack.c.b16 %v1058, %v1056
        %v1239 = vpack.c.b16 %v1061, %v1059
        %v1240 = vpack.c.b16 %v1062, %v1060
        %v1241 = vpack.c.b16 %v1065, %v1063
        %v1242 = vpack.c.b16 %v1066, %v1064
        %v1243 = vpack.c.b16 %v1069, %v1067
        %v1244 = vpack.c.b16 %v1070, %v1068
        %v1245 = vpack.c.b16 %v1073, %v1071
        %v1246 = vpack.c.b16 %v1074, %v1072
        %v1247 = vpack.c.b16 %v1077, %v1075
        %v1248 = vpack.c.b16 %v1078, %v1076
        %v1249 = vpack.c.b16 %v1081, %v1079
        %v1250 = vpack.c.b16 %v1082, %v1080
        %v1251 = vpack.c.b16 %v1085, %v1083
        %v1252 = vpack.c.b16 %v1086, %v1084
        %v1253 = vpack.c.b16 %v1089, %v1087
        %v1254 = vpack.c.b16 %v1090, %v1088
        %v1255 = vpack.c.b16 %v1093, %v1091
        %v1256 = vpack.c.b16 %v1094, %v1092
        %v1257 = vpack.c.b16 %v1097, %v1095
        %v1258 = vpack.c.b16 %v1098, %v1096
        %v1259 = vpack.c.b16 %v1101, %v1099
        %v1260 = vpack.c.b16 %v1102, %v1100
        %v1261 = vpack.c.b16 %v1105, %v1103
        %v1262 = vpack.c.b16 %v1106, %v1104
        %v1263 = vpack.c.b16 %v1109, %v1107
        %v1264 = vpack.c.b16 %v1110, %v1108
        %v1265 = vpack.c.b16 %v1113, %v1111
        %v1266 = vpack.c.b16 %v1114, %v1112
        %v1267 = vpack.c.b16 %v1117, %v1115
        %v1268 = vpack.c.b16 %v1118, %v1116
        %v1269 = vpack.c.b16 %v1121, %v1119
        %v1270 = vpack.c.b16 %v1122, %v1120
        %v1271 = vpack.c.b16 %v1125, %v1123
        %v1272 = vpack.c.b16 %v1126, %v1124
        %v1273 = vpack.c.b16 %v1129, %v1127
        %v1274 = vpack.c.b16 %v1130, %v1128
        %v1275 = vpack.c.b16 %v1133, %v1131
        %v1276 = vpack.c.b16 %v1134, %v1132
        %v1277 = vpack.c.b16 %v1137, %v1135
        %v1278 = vpack.c.b16 %v1138, %v1136
        %v1279 = vpack.c.b16 %v1141, %v1139
        %v1280 = vpack.c.b16 %v1142, %v1140
        %v1281 = vpack.c.b16 %v1145, %v1143
        %v1282 = vpack.c.b16 %v1146, %v1144
        %v1283 = vpack.c.b16 %v1149, %v1147
        %v1284 = vpack.c.b16 %v1150, %v1148
        %v1285 = vpack.c.b16 %v1153, %v1151
        %v1286 = vpack.c.b16 %v1154, %v1152
        %v1287 = vpack.c.b16 %v1157, %v1155
        %v1288 = vpack.c.b16 %v1158, %v1156
        %v1289 = vpack.c.b16 %v1161, %v1159
        %v1290 = vpack.c.b16 %v1162, %v1160
        %v1291 = vpack.c.b16 %v1165, %v1163
        %v1292 = vpack.c.b16 %v1166, %v1164
        %v1293 = vpack.c.b16 %v1169, %v1167
        %v1294 = vpack.c.b16 %v1170, %v1168
        %v1295 = vpack.c.b16 %v1173, %v1171
        %v1296 = vpack.c.b16 %v1174, %v1172
        %v1297 = vpack.c.b16 %v1177, %v1175
        %v1298 = vpack.c.b16 %v1178, %v1176
        %v1299 = vpack.c.b16 %v1181, %v1179
        %v1300 = vpack.c.b16 %v1182, %v1180
        %v1301 = vpack.c.b16 %v1185, %v1183
        %v1302 = vpack.c.b16 %v1186, %v1184
        %v1303 = vpack.c.b16 %v1189, %v1187
        %v1304 = vpack.c.b16 %v1190, %v1188
        %v1305 = vpack.c.b16 %v1193, %v1191
        %v1306 = vpack.c.b16 %v1194, %v1192
        %v1307 = vpack.c.b16 %v1197, %v1195
        %v1308 = vpack.c.b16 %v1198, %v1196
        %v1309 = vpack.c.b16 %v1201, %v1199
        %v1310 = vpack.c.b16 %v1202, %v1200
        %v1311 = vpack.c.b16 %v1205, %v1203
        %v1312 = vpack.c.b16 %v1206, %v1204
        %v1313 = vpack.c.b16 %v1209, %v1207
        %v1314 = vpack.c.b16 %v1210, %v1208
        %v1315 = vpack.c.b16 %v1213, %v1211
        %v1316 = vpack.c.b16 %v1214, %v1212
        %v1317 = vpack.c.b16 %v1217, %v1215
        %v1318 = vpack.c.b16 %v1218, %v1216
        %v1319 = vpack.c.b16 %v1221, %v1219
        %v1320 = vpack.c.b16 %v1222, %v1220
        %v1321 = vpack.c.b16 %v1225, %v1223
        %v1322 = vpack.c.b16 %v1226, %v1224
        %1419 = vmatprep.subr.bf16.mxu0 %v1228
        %1420 = vmatpush1.bf16.msra.mxu0 %v1227
        %1421 = vmatprep.subr.bf16.mxu0 %v1230
        %1422 = vmatpush1.bf16.msra.mxu0 %v1229
        %1423 = vmatprep.subr.bf16.mxu0 %v1232
        %1424 = vmatpush1.bf16.msra.mxu0 %v1231
        %1425 = vmatprep.subr.bf16.mxu0 %v1234
        %1426 = vmatpush1.bf16.msra.mxu0 %v1233
        %1427 = vmatprep.subr.bf16.mxu0 %v1236
        %1428 = vmatpush1.bf16.msra.mxu0 %v1235
        %1429 = vmatprep.subr.bf16.mxu0 %v1238
        %1430 = vmatpush1.bf16.msra.mxu0 %v1237
        %1431 = vmatprep.subr.bf16.mxu0 %v1240
        %1432 = vmatpush1.bf16.msra.mxu0 %v1239
        %1433 = vmatprep.subr.bf16.mxu0 %v1242
        %1434 = vmatpush1.bf16.msra.mxu0 %v1241
        %1435 = vmatprep.subr.bf16.mxu0 %v1244
        %1436 = vmatpush1.bf16.msra.mxu0 %v1243
        %1437 = vmatprep.subr.bf16.mxu0 %v1246
        %1438 = vmatpush1.bf16.msra.mxu0 %v1245
        %1439 = vmatprep.subr.bf16.mxu0 %v1248
        %1440 = vmatpush1.bf16.msra.mxu0 %v1247
        %1441 = vmatprep.subr.bf16.mxu0 %v1250
        %1442 = vmatpush1.bf16.msra.mxu0 %v1249
        %1443 = vmatprep.subr.bf16.mxu0 %v1252
        %1444 = vmatpush1.bf16.msra.mxu0 %v1251
        %1445 = vmatprep.subr.bf16.mxu0 %v1254
        %1446 = vmatpush1.bf16.msra.mxu0 %v1253
        %1447 = vmatprep.subr.bf16.mxu0 %v1256
        %1448 = vmatpush1.bf16.msra.mxu0 %v1255
        %1449 = vmatprep.subr.bf16.mxu0 %v1258
        %1450 = vmatpush1.bf16.msra.mxu0 %v1257
        %1451 = vmatprep.mubr.bf16.mxu0 %v826
        %1452 = vmatmul.mubr.bf16.gmra.mrb[0].mxu0 %v825
        %v1453 = vpop.f32.mrb[0].mxu0
        %v1454 = vadd.f32 %v932, %v1453
        %v1455 = vpop.f32.mrb[0].mxu0
        %v1456 = vadd.f32 %v936, %v1455
        %v1457 = vpop.f32.mrb[0].mxu0
        %v1458 = vpop.f32.mrb[0].mxu0
        %1459 = vdwg.mxu0
        %1460 = vmatprep.subr.bf16.mxu0 %v1260
        %1461 = vmatpush1.bf16.msra.mxu0 %v1259
        %1462 = vmatprep.subr.bf16.mxu0 %v1262
        %1463 = vmatpush1.bf16.msra.mxu0 %v1261
        %1464 = vmatprep.subr.bf16.mxu0 %v1264
        %1465 = vmatpush1.bf16.msra.mxu0 %v1263
        %1466 = vmatprep.subr.bf16.mxu0 %v1266
        %1467 = vmatpush1.bf16.msra.mxu0 %v1265
        %1468 = vmatprep.subr.bf16.mxu0 %v1268
        %1469 = vmatpush1.bf16.msra.mxu0 %v1267
        %1470 = vmatprep.subr.bf16.mxu0 %v1270
        %1471 = vmatpush1.bf16.msra.mxu0 %v1269
        %1472 = vmatprep.subr.bf16.mxu0 %v1272
        %1473 = vmatpush1.bf16.msra.mxu0 %v1271
        %1474 = vmatprep.subr.bf16.mxu0 %v1274
        %1475 = vmatpush1.bf16.msra.mxu0 %v1273
        %1476 = vmatprep.subr.bf16.mxu0 %v1276
        %1477 = vmatpush1.bf16.msra.mxu0 %v1275
        %1478 = vmatprep.subr.bf16.mxu0 %v1278
        %1479 = vmatpush1.bf16.msra.mxu0 %v1277
        %1480 = vmatprep.subr.bf16.mxu0 %v1280
        %1481 = vmatpush1.bf16.msra.mxu0 %v1279
        %1482 = vmatprep.subr.bf16.mxu0 %v1282
        %1483 = vmatpush1.bf16.msra.mxu0 %v1281
        %1484 = vmatprep.subr.bf16.mxu0 %v1284
        %1485 = vmatpush1.bf16.msra.mxu0 %v1283
        %1486 = vmatprep.subr.bf16.mxu0 %v1286
        %1487 = vmatpush1.bf16.msra.mxu0 %v1285
        %1488 = vmatprep.subr.bf16.mxu0 %v1288
        %1489 = vmatpush1.bf16.msra.mxu0 %v1287
        %1490 = vmatprep.subr.bf16.mxu0 %v1290
        %1491 = vmatpush1.bf16.msra.mxu0 %v1289
        %1492 = vmatprep.mubr.bf16.mxu0 %v828
        %1493 = vmatmul.mubr.bf16.gmra.mrb[0].mxu0 %v827
        %v1494 = vpop.f32.mrb[0].mxu0
        %v1495 = vadd.f32 %v1454, %v1494
        %v1496 = vpop.f32.mrb[0].mxu0
        %v1497 = vadd.f32 %v1456, %v1496
        %v1498 = vpop.f32.mrb[0].mxu0
        %v1499 = vpop.f32.mrb[0].mxu0
        %1500 = vdwg.mxu0
        %1501 = vmatprep.subr.bf16.mxu0 %v1292
        %1502 = vmatpush1.bf16.msra.mxu0 %v1291
        %1503 = vmatprep.subr.bf16.mxu0 %v1294
        %1504 = vmatpush1.bf16.msra.mxu0 %v1293
        %1505 = vmatprep.subr.bf16.mxu0 %v1296
        %1506 = vmatpush1.bf16.msra.mxu0 %v1295
        %1507 = vmatprep.subr.bf16.mxu0 %v1298
        %1508 = vmatpush1.bf16.msra.mxu0 %v1297
        %1509 = vmatprep.subr.bf16.mxu0 %v1300
        %1510 = vmatpush1.bf16.msra.mxu0 %v1299
        %1511 = vmatprep.subr.bf16.mxu0 %v1302
        %1512 = vmatpush1.bf16.msra.mxu0 %v1301
        %1513 = vmatprep.subr.bf16.mxu0 %v1304
        %1514 = vmatpush1.bf16.msra.mxu0 %v1303
        %1515 = vmatprep.subr.bf16.mxu0 %v1306
        %1516 = vmatpush1.bf16.msra.mxu0 %v1305
        %1517 = vmatprep.subr.bf16.mxu0 %v1308
        %1518 = vmatpush1.bf16.msra.mxu0 %v1307
        %1519 = vmatprep.subr.bf16.mxu0 %v1310
        %1520 = vmatpush1.bf16.msra.mxu0 %v1309
        %1521 = vmatprep.subr.bf16.mxu0 %v1312
        %1522 = vmatpush1.bf16.msra.mxu0 %v1311
        %1523 = vmatprep.subr.bf16.mxu0 %v1314
        %1524 = vmatpush1.bf16.msra.mxu0 %v1313
        %1525 = vmatprep.subr.bf16.mxu0 %v1316
        %1526 = vmatpush1.bf16.msra.mxu0 %v1315
        %1527 = vmatprep.subr.bf16.mxu0 %v1318
        %1528 = vmatpush1.bf16.msra.mxu0 %v1317
        %1529 = vmatprep.subr.bf16.mxu0 %v1320
        %1530 = vmatpush1.bf16.msra.mxu0 %v1319
        %1531 = vmatprep.subr.bf16.mxu0 %v1322
        %1532 = vmatpush1.bf16.msra.mxu0 %v1321
        %1533 = vmatprep.mubr.bf16.mxu0 %v830
        %1534 = vmatmul.mubr.bf16.gmra.mrb[0].mxu0 %v829
        %v1535 = vpop.f32.mrb[0].mxu0
        %v1536 = vadd.f32 %v1495, %v1535
        %v1537 = vpop.f32.mrb[0].mxu0
        %v1538 = vadd.f32 %v1497, %v1537
        %v1539 = vpop.f32.mrb[0].mxu0
        %v1540 = vpop.f32.mrb[0].mxu0
        %1541 = vdwg.mxu0
        %1542 = vst [vmem:[%s217] sm:$0xff] %v1536
        %1543 = vst.msk [vmem:[%s217 + $0x8] sm:$0xff] %vm692, %v1538
        %s1544 = sand.u32 %s137, 1
        %s1545 = scalar_lea.sflag [#allocation3], %s1544
        %s1546 = sand.u32 %s137, 1
        %s1547 = smul.addr %s1546, 16
        %s1548 = scalar_lea.vmem [#allocation2], %s1547
        // Predicated region
        $region41: #{tpu_custom_call.1} parent=39 // pred_check
          %p1549 = pneg %p147
        $region42: #{tpu_custom_call.1} parent=39 // pred_check_branch
          %1551 = sbr.rel (%p1549) target = $region44
        $region43: #{tpu_custom_call.1} parent=39 // pred_region
          %s1553 = ssub.s32 256, 256
          %1554 = vsyncadd %s1545, %s1553
          %s1555 = smul.addr %s19, 2
          %s1556 = smul.addr %s1555, 128
          %s1557 = scalar_lea.hbm %s5, %s1556
          %s1559 = sshll.u32 %s1548, 4
          %s1560 = int_to_ptr.vmem [resolvable:$true] %s1559
          %1562 = dma.vmem_to_hbm [thread:$0]  %s1560, 256, %s1557, %s1545
        $region44: #{tpu_custom_call.1} parent=39 // pred_fallthru
          _
      $region40: #{tpu_custom_call.1} parent=5 // pred_fallthru
        _
      %p1563 = scmp.le.s32.totalorder 2, %s14
      // Predicated region
      $region45: #{tpu_custom_call.1} parent=5 // pred_check
        %p1564 = pneg %p1563
      $region46: #{tpu_custom_call.1} parent=5 // pred_check_branch
        %1566 = sbr.rel (%p1564) target = $region48
      $region47: #{tpu_custom_call.1} parent=5 // pred_region
        %s1567 = ssub.s32 %s14, 2
        // Predicated region
        $region49: #{tpu_custom_call.1} parent=47 // pred_check
          %p1568 = pneg %p153
        $region50: #{tpu_custom_call.1} parent=47 // pred_check_branch
          %1570 = sbr.rel (%p1568) target = $region52
        $region51: #{tpu_custom_call.1} parent=47 // pred_region
          %s1571 = sand.u32 %s138, 1
          %s1572 = scalar_lea.sflag [#allocation3], %s1571
          %s1573 = sand.u32 %s138, 1
          %s1574 = smul.addr %s1573, 16
          %s1575 = scalar_lea.vmem [#allocation2], %s1574
          %1576 = dma.done %s1572, 256
        $region52: #{tpu_custom_call.1} parent=47 // pred_fallthru
          _
      $region48: #{tpu_custom_call.1} parent=5 // pred_fallthru
        _
    $region6: #{tpu_custom_call.1} parent=1 // loop_footer
      %s18 = sadd.s32 1, %s14
    $region7: #{tpu_custom_call.1} parent=1 // loop_footer_branch
      %13 = sbr.rel target = $region3
    $region8: #{tpu_custom_call.1} parent=1 // loop_exit
      _
    %1577 = vsyncpa [#allocation3], 1
    %s1578 = scalar_lea.sflag [#allocation3], 1
    %1579 = vsyncpa %s1578, 1

</llo_original>
